<compile_context>
chip_gen: v7x
topology: tpu7x:2x2x1
jax: 0.10.0
libtpu: 0.0.40
codegen_flags: <defaults>
</compile_context>

<pallas_src>
import functools

import jax
import jax.numpy as jnp
from jax import lax
from jax.experimental import pallas as pl
from jax.experimental.pallas import tpu as pltpu  # noqa: F401  (TPU backend)

_LANE = 128
_SUBLANE = 8


def _round_up(x, m):
    return -(-x // m) * m


def _plan_groups(cins, couts):
    """Group consecutive scales with equal Cin whose Couts fit one 128-col slab.

    Static python only (shapes). Returns (groups, group_of, col0).
    """
    groups = []
    for i in range(len(cins)):
        if (groups and cins[groups[-1][0]] == cins[i]
                and sum(couts[j] for j in groups[-1]) + couts[i] <= _LANE):
            groups[-1].append(i)
        else:
            groups.append([i])
    group_of, col0 = {}, {}
    for gi, g in enumerate(groups):
        c = 0
        for j in g:
            group_of[j] = gi
            col0[j] = c
            c += couts[j]
        assert c <= _LANE  # disjoint column ranges inside the 128-wide slab
    return groups, group_of, col0


def pack_output_block_params(weights, biases, dtype=jnp.float32):
    """One-time (init) packing of 1x1-conv weights/biases into lane-dense slabs.

    weights[i]: (Cout_i, Cin_i, 1, 1);  biases[i]: (Cout_i,)
    Returns (w_slabs, b_slab): tuple of (Cin_g, 128) arrays, (n_groups, 128).
    """
    couts = tuple(int(w.shape[0]) for w in weights)
    cins = tuple(int(w.shape[1]) for w in weights)
    groups, _, col0 = _plan_groups(cins, couts)
    w_slabs, b_rows = [], []
    for g in groups:
        k = cins[g[0]]
        wg = jnp.zeros((k, _LANE), dtype)
        bg = jnp.zeros((_LANE,), jnp.float32)
        for j in g:
            w2d = jnp.asarray(weights[j]).reshape(couts[j], k).T.astype(dtype)
            wg = wg.at[:, col0[j]:col0[j] + couts[j]].set(w2d)
            bg = bg.at[col0[j]:col0[j] + couts[j]].set(
                jnp.asarray(biases[j]).astype(jnp.float32))
        w_slabs.append(wg)
        b_rows.append(bg)
    return tuple(w_slabs), jnp.stack(b_rows, axis=0)


def _make_kernel(n_scales, n_groups, batch, metas):
    """metas[s] = (group, row0, hw, col0, cout): static output-slab layout."""

    def kernel(*refs):
        x_refs = refs[:n_scales]
        w_refs = refs[n_scales:n_scales + n_groups]
        b_ref = refs[n_scales + n_groups]
        o_ref = refs[n_scales + n_groups + 1]
        for s in range(n_scales):                     # tiny static unroll
            g, row0, hw, _, _ = metas[s]
            for b in range(batch):
                xb = x_refs[s][b]                     # (Cin, HW)
                # (HW, 128) = xb^T @ W  (transposed-LHS contraction; any
                # transpose Mosaic inserts goes to the idle XLU slot).
                y = lax.dot_general(
                    xb, w_refs[g][...],
                    dimension_numbers=(((0,), (0,)), ((), ())),
                    preferred_element_type=jnp.float32)
                y = y + b_ref[g:g + 1, :]             # bias (garbage cols never read)
                r0 = row0 + b * hw                    # 8-aligned for BlazePalm shapes
                o_ref[r0:r0 + hw, :] = y.astype(o_ref.dtype)

    return kernel


def output_block_forward(scale_inputs, w_slabs, b_slab, *, out_channels,
                         num_outputs=1):
    """Per-call path (jit this). Mirrors OutputBlock.forward with packed params."""
    n_scales = len(scale_inputs)
    batch = scale_inputs[0].shape[0]
    dtype = scale_inputs[0].dtype
    cins = tuple(int(x.shape[1]) for x in scale_inputs)
    hws = tuple(int(x.shape[2]) * int(x.shape[3]) for x in scale_inputs)
    couts = tuple(out_channels)
    groups, group_of, col0 = _plan_groups(cins, couts)
    n_groups = len(groups)
    assert len(w_slabs) == n_groups and b_slab.shape[0] == n_groups

    # Free reshape of NCHW: (B, Cin, H, W) -> (B, Cin, H*W). No XLA transpose.
    x3 = [x.reshape(batch, cins[s], hws[s]) for s, x in enumerate(scale_inputs)]

    # Static row layout of the lane-dense slab: scale-major (batch-major within
    # a scale), each scale's block rounded to 8 rows so stores stay unmasked.
    row0, r = [], 0
    for s in range(n_scales):
        row0.append(r)
        r = _round_up(r + batch * hws[s], _SUBLANE)
    m_total = _round_up(r, _SUBLANE)

    metas = tuple((group_of[s], row0[s], hws[s], col0[s], couts[s])
                  for s in range(n_scales))
    kernel = _make_kernel(n_scales, n_groups, batch, metas)

    flops = 2 * sum(batch * hws[s] * cins[s] * _LANE for s in range(n_scales))
    bytes_accessed = int(
        sum(x.size * x.dtype.itemsize for x in x3)
        + sum(w.size * w.dtype.itemsize for w in w_slabs)
        + b_slab.size * b_slab.dtype.itemsize
        + m_total * _LANE * jnp.dtype(dtype).itemsize)

    # No grid: single invocation, whole operands in VMEM, no double buffering,
    # single TensorCore.
    out_slab = pl.pallas_call(
        kernel,
        out_shape=jax.ShapeDtypeStruct((m_total, _LANE), dtype),
        cost_estimate=pl.CostEstimate(flops=flops, transcendentals=0,
                                      bytes_accessed=bytes_accessed),
    )(*x3, *w_slabs, b_slab)

    # Thin XLA glue: slice each scale out of the slab, reproducing
    # permute(0,2,3,1) + reshape + cat of the PyTorch module.
    pieces = []
    for s in range(n_scales):
        _, r0, hw, c0, co = metas[s]
        assert (hw * co) % num_outputs == 0
        y = out_slab[r0:r0 + batch * hw, c0:c0 + co]   # (B*HW, Cout)
        pieces.append(y.reshape(batch, hw * co))
    flat = jnp.concatenate(pieces, axis=1)
    return flat.reshape(batch, flat.shape[1] // num_outputs, num_outputs)


def _reference_forward(scale_inputs, weights, biases, num_outputs=1):
    bs = scale_inputs[0].shape[0]
    outs = []
    for x, w, b in zip(scale_inputs, weights, biases):
        y = jnp.einsum("bchw,oc->bohw", x, w[:, :, 0, 0]) + b[None, :, None, None]
        y = jnp.transpose(y, (0, 2, 3, 1)).reshape(bs, -1, num_outputs)
        outs.append(y)
    return jnp.concatenate(outs, axis=1)


if __name__ == "__main__":
    num_scales = 3
    in_channels = (128, 256, 256)
    out_channels = (2, 2, 6)
    spatials = (8, 4, 4)        # small BlazePalm-like spatial sizes
    B = 2
    num_outputs = 1

    key = jax.random.PRNGKey(0)
    scale_inputs, weights, biases = [], [], []
    for i in range(num_scales):
        kx, kw, kb = jax.random.split(jax.random.fold_in(key, i), 3)
        x = jax.random.normal(
            kx, (B, in_channels[i], spatials[i], spatials[i]), jnp.float32)
        w = 0.05 * jax.random.normal(
            kw, (out_channels[i], in_channels[i], 1, 1), jnp.float32)
        b = 0.05 * jax.random.normal(kb, (out_channels[i],), jnp.float32)
        scale_inputs.append(x)
        weights.append(w)
        biases.append(b)

    # Init-time packing (weights/biases are inference constants): done ONCE.
    w_slabs, b_slab = pack_output_block_params(weights, biases, jnp.float32)

    fwd = jax.jit(functools.partial(output_block_forward,
                                    out_channels=out_channels,
                                    num_outputs=num_outputs))
    out = jax.block_until_ready(fwd(scale_inputs, w_slabs, b_slab))

    expected_rows = sum(s * s * c for s, c in zip(spatials, out_channels))
    assert out.shape == (B, expected_rows // num_outputs, num_outputs), out.shape

    ref = _reference_forward(scale_inputs, weights, biases, num_outputs)
    assert jnp.allclose(out, ref, atol=1e-4, rtol=1e-4), (
        float(jnp.max(jnp.abs(out - ref))))

    print("KERNEL_OK")
</pallas_src>

<mosaic_0001>
module attributes {stable_mosaic.version = 11 : i64} {
  func.func @kernel(%arg0: memref<2x128x64xf32, #tpu.memory_space<vmem>>, %arg1: memref<2x256x16xf32, #tpu.memory_space<vmem>>, %arg2: memref<2x256x16xf32, #tpu.memory_space<vmem>>, %arg3: memref<128x128xf32, #tpu.memory_space<vmem>>, %arg4: memref<256x128xf32, #tpu.memory_space<vmem>>, %arg5: memref<2x128xf32, #tpu.memory_space<vmem>>, %arg6: memref<192x128xf32, #tpu.memory_space<vmem>>) attributes {dimension_semantics = [], scalar_prefetch = 0 : i64, scratch_operands = 0 : i64, tpu.core_type = #tpu.core_type<tc>} {
    %c0 = arith.constant 0 : index
    %c0_0 = arith.constant 0 : index
    %c0_1 = arith.constant 0 : index
    %0 = vector.load %arg0[%c0, %c0_0, %c0_1] : memref<2x128x64xf32, #tpu.memory_space<vmem>>, vector<1x128x64xf32>
    %1 = vector.shape_cast %0 : vector<1x128x64xf32> to vector<128x64xf32>
    %c0_2 = arith.constant 0 : index
    %c0_3 = arith.constant 0 : index
    %2 = vector.load %arg3[%c0_2, %c0_3] : memref<128x128xf32, #tpu.memory_space<vmem>>, vector<128x128xf32>
    %cst = arith.constant dense<0.000000e+00> : vector<64x128xf32>
    %3 = tpu.matmul %1, %2, %cst {dimension_numbers = #tpu.dot_dimension_numbers<[0], [0], [1], [1], [0, 1, 1, 1], [], []>} : vector<128x64xf32>, vector<128x128xf32>, vector<64x128xf32> -> vector<64x128xf32>
    %c0_4 = arith.constant 0 : index
    %c0_5 = arith.constant 0 : index
    %4 = vector.load %arg5[%c0_4, %c0_5] : memref<2x128xf32, #tpu.memory_space<vmem>>, vector<1x128xf32>
    %5 = vector.broadcast %4 : vector<1x128xf32> to vector<64x128xf32>
    %6 = arith.addf %3, %5 : vector<64x128xf32>
    %c0_6 = arith.constant 0 : index
    %c0_7 = arith.constant 0 : index
    %7 = vector.load %arg6[%c0_6, %c0_7] : memref<192x128xf32, #tpu.memory_space<vmem>>, vector<64x128xf32>
    tpu.vector_store %arg6[%c0_6, %c0_7], %6 {strides = array<i32>} : memref<192x128xf32, #tpu.memory_space<vmem>>, vector<64x128xf32>,
    %c1 = arith.constant 1 : index
    %c0_8 = arith.constant 0 : index
    %c0_9 = arith.constant 0 : index
    %8 = vector.load %arg0[%c1, %c0_8, %c0_9] : memref<2x128x64xf32, #tpu.memory_space<vmem>>, vector<1x128x64xf32>
    %9 = vector.shape_cast %8 : vector<1x128x64xf32> to vector<128x64xf32>
    %c0_10 = arith.constant 0 : index
    %c0_11 = arith.constant 0 : index
    %10 = vector.load %arg3[%c0_10, %c0_11] : memref<128x128xf32, #tpu.memory_space<vmem>>, vector<128x128xf32>
    %cst_12 = arith.constant dense<0.000000e+00> : vector<64x128xf32>
    %11 = tpu.matmul %9, %10, %cst_12 {dimension_numbers = #tpu.dot_dimension_numbers<[0], [0], [1], [1], [0, 1, 1, 1], [], []>} : vector<128x64xf32>, vector<128x128xf32>, vector<64x128xf32> -> vector<64x128xf32>
    %c0_13 = arith.constant 0 : index
    %c0_14 = arith.constant 0 : index
    %12 = vector.load %arg5[%c0_13, %c0_14] : memref<2x128xf32, #tpu.memory_space<vmem>>, vector<1x128xf32>
    %13 = vector.broadcast %12 : vector<1x128xf32> to vector<64x128xf32>
    %14 = arith.addf %11, %13 : vector<64x128xf32>
    %c64 = arith.constant 64 : index
    %c0_15 = arith.constant 0 : index
    %15 = vector.load %arg6[%c64, %c0_15] : memref<192x128xf32, #tpu.memory_space<vmem>>, vector<64x128xf32>
    tpu.vector_store %arg6[%c64, %c0_15], %14 {strides = array<i32>} : memref<192x128xf32, #tpu.memory_space<vmem>>, vector<64x128xf32>,
    %c0_16 = arith.constant 0 : index
    %c0_17 = arith.constant 0 : index
    %c0_18 = arith.constant 0 : index
    %16 = vector.load %arg1[%c0_16, %c0_17, %c0_18] : memref<2x256x16xf32, #tpu.memory_space<vmem>>, vector<1x256x16xf32>
    %17 = vector.shape_cast %16 : vector<1x256x16xf32> to vector<256x16xf32>
    %c0_19 = arith.constant 0 : index
    %c0_20 = arith.constant 0 : index
    %18 = vector.load %arg4[%c0_19, %c0_20] : memref<256x128xf32, #tpu.memory_space<vmem>>, vector<256x128xf32>
    %cst_21 = arith.constant dense<0.000000e+00> : vector<16x128xf32>
    %19 = tpu.matmul %17, %18, %cst_21 {dimension_numbers = #tpu.dot_dimension_numbers<[0], [0], [1], [1], [0, 1, 1, 1], [], []>} : vector<256x16xf32>, vector<256x128xf32>, vector<16x128xf32> -> vector<16x128xf32>
    %c1_22 = arith.constant 1 : index
    %c0_23 = arith.constant 0 : index
    %20 = vector.load %arg5[%c1_22, %c0_23] : memref<2x128xf32, #tpu.memory_space<vmem>>, vector<1x128xf32>
    %21 = vector.broadcast %20 : vector<1x128xf32> to vector<16x128xf32>
    %22 = arith.addf %19, %21 : vector<16x128xf32>
    %c128 = arith.constant 128 : index
    %c0_24 = arith.constant 0 : index
    %23 = vector.load %arg6[%c128, %c0_24] : memref<192x128xf32, #tpu.memory_space<vmem>>, vector<16x128xf32>
    tpu.vector_store %arg6[%c128, %c0_24], %22 {strides = array<i32>} : memref<192x128xf32, #tpu.memory_space<vmem>>, vector<16x128xf32>,
    %c1_25 = arith.constant 1 : index
    %c0_26 = arith.constant 0 : index
    %c0_27 = arith.constant 0 : index
    %24 = vector.load %arg1[%c1_25, %c0_26, %c0_27] : memref<2x256x16xf32, #tpu.memory_space<vmem>>, vector<1x256x16xf32>
    %25 = vector.shape_cast %24 : vector<1x256x16xf32> to vector<256x16xf32>
    %c0_28 = arith.constant 0 : index
    %c0_29 = arith.constant 0 : index
    %26 = vector.load %arg4[%c0_28, %c0_29] : memref<256x128xf32, #tpu.memory_space<vmem>>, vector<256x128xf32>
    %cst_30 = arith.constant dense<0.000000e+00> : vector<16x128xf32>
    %27 = tpu.matmul %25, %26, %cst_30 {dimension_numbers = #tpu.dot_dimension_numbers<[0], [0], [1], [1], [0, 1, 1, 1], [], []>} : vector<256x16xf32>, vector<256x128xf32>, vector<16x128xf32> -> vector<16x128xf32>
    %c1_31 = arith.constant 1 : index
    %c0_32 = arith.constant 0 : index
    %28 = vector.load %arg5[%c1_31, %c0_32] : memref<2x128xf32, #tpu.memory_space<vmem>>, vector<1x128xf32>
    %29 = vector.broadcast %28 : vector<1x128xf32> to vector<16x128xf32>
    %30 = arith.addf %27, %29 : vector<16x128xf32>
    %c144 = arith.constant 144 : index
    %c0_33 = arith.constant 0 : index
    %31 = vector.load %arg6[%c144, %c0_33] : memref<192x128xf32, #tpu.memory_space<vmem>>, vector<16x128xf32>
    tpu.vector_store %arg6[%c144, %c0_33], %30 {strides = array<i32>} : memref<192x128xf32, #tpu.memory_space<vmem>>, vector<16x128xf32>,
    %c0_34 = arith.constant 0 : index
    %c0_35 = arith.constant 0 : index
    %c0_36 = arith.constant 0 : index
    %32 = vector.load %arg2[%c0_34, %c0_35, %c0_36] : memref<2x256x16xf32, #tpu.memory_space<vmem>>, vector<1x256x16xf32>
    %33 = vector.shape_cast %32 : vector<1x256x16xf32> to vector<256x16xf32>
    %c0_37 = arith.constant 0 : index
    %c0_38 = arith.constant 0 : index
    %34 = vector.load %arg4[%c0_37, %c0_38] : memref<256x128xf32, #tpu.memory_space<vmem>>, vector<256x128xf32>
    %cst_39 = arith.constant dense<0.000000e+00> : vector<16x128xf32>
    %35 = tpu.matmul %33, %34, %cst_39 {dimension_numbers = #tpu.dot_dimension_numbers<[0], [0], [1], [1], [0, 1, 1, 1], [], []>} : vector<256x16xf32>, vector<256x128xf32>, vector<16x128xf32> -> vector<16x128xf32>
    %c1_40 = arith.constant 1 : index
    %c0_41 = arith.constant 0 : index
    %36 = vector.load %arg5[%c1_40, %c0_41] : memref<2x128xf32, #tpu.memory_space<vmem>>, vector<1x128xf32>
    %37 = vector.broadcast %36 : vector<1x128xf32> to vector<16x128xf32>
    %38 = arith.addf %35, %37 : vector<16x128xf32>
    %c160 = arith.constant 160 : index
    %c0_42 = arith.constant 0 : index
    %39 = vector.load %arg6[%c160, %c0_42] : memref<192x128xf32, #tpu.memory_space<vmem>>, vector<16x128xf32>
    tpu.vector_store %arg6[%c160, %c0_42], %38 {strides = array<i32>} : memref<192x128xf32, #tpu.memory_space<vmem>>, vector<16x128xf32>,
    %c1_43 = arith.constant 1 : index
    %c0_44 = arith.constant 0 : index
    %c0_45 = arith.constant 0 : index
    %40 = vector.load %arg2[%c1_43, %c0_44, %c0_45] : memref<2x256x16xf32, #tpu.memory_space<vmem>>, vector<1x256x16xf32>
    %41 = vector.shape_cast %40 : vector<1x256x16xf32> to vector<256x16xf32>
    %c0_46 = arith.constant 0 : index
    %c0_47 = arith.constant 0 : index
    %42 = vector.load %arg4[%c0_46, %c0_47] : memref<256x128xf32, #tpu.memory_space<vmem>>, vector<256x128xf32>
    %cst_48 = arith.constant dense<0.000000e+00> : vector<16x128xf32>
    %43 = tpu.matmul %41, %42, %cst_48 {dimension_numbers = #tpu.dot_dimension_numbers<[0], [0], [1], [1], [0, 1, 1, 1], [], []>} : vector<256x16xf32>, vector<256x128xf32>, vector<16x128xf32> -> vector<16x128xf32>
    %c1_49 = arith.constant 1 : index
    %c0_50 = arith.constant 0 : index
    %44 = vector.load %arg5[%c1_49, %c0_50] : memref<2x128xf32, #tpu.memory_space<vmem>>, vector<1x128xf32>
    %45 = vector.broadcast %44 : vector<1x128xf32> to vector<16x128xf32>
    %46 = arith.addf %43, %45 : vector<16x128xf32>
    %c176 = arith.constant 176 : index
    %c0_51 = arith.constant 0 : index
    %47 = vector.load %arg6[%c176, %c0_51] : memref<192x128xf32, #tpu.memory_space<vmem>>, vector<16x128xf32>
    tpu.vector_store %arg6[%c176, %c0_51], %46 {strides = array<i32>} : memref<192x128xf32, #tpu.memory_space<vmem>>, vector<16x128xf32>,
    return
  }
}

</mosaic_0001>

<llo_original>
// kernel: output_block_forward.1
$region0: #{output_block_forward.1}
  #allocation0 [shape = 'u32[]', space=smem, size = 0x4, offset = 0x4, fixed_abs, tag = 'smem constant byte address 0x4 - core index']
  #allocation1 [shape = 'u32[144,128]{1,0:T(1,128)}', space=vmem, size = 0x12000, scoped, tag = 'internal scratch']
  %s0 = inlined_call_operand.vmem [shape: f32[2,128,64], index: 0, kind: input, shape index: {}]
  %s1 = inlined_call_operand.vmem [shape: f32[2,256,16], index: 1, kind: input, shape index: {}]
  %s2 = inlined_call_operand.vmem [shape: f32[2,256,16], index: 2, kind: input, shape index: {}]
  %s3 = inlined_call_operand.vmem [shape: f32[128,128], index: 3, kind: input, shape index: {}]
  %s4 = inlined_call_operand.vmem [shape: f32[256,128], index: 4, kind: input, shape index: {}]
  %s5 = inlined_call_operand.vmem [shape: f32[2,128], index: 5, kind: input, shape index: {}]
  %s6 = inlined_call_operand.vmem [shape: f32[192,128], index: 6, kind: output, shape index: {}]
  %s7 = sld [smem:[#allocation0]]
  $region34: #{output_block_forward.1} parent=0
    _
  %s9 = ssub.s32 1, %s7
  %s10 = scalar_select 0, %s9, %s7
  // Predicated region
  $region2: #{output_block_forward.1} parent=0 // pred_check
    _
  $region3: #{output_block_forward.1} parent=0 // pred_check_branch
    %12 = sbr.rel (0) target = $region5
  $region4: #{output_block_forward.1} parent=0 // pred_region
    _
  $region5: #{output_block_forward.1} parent=0 // pred_fallthru
    _
  // Predicated region
  $region6: #{output_block_forward.1} parent=0 // pred_check
    _
  $region7: #{output_block_forward.1} parent=0 // pred_check_branch
    %14 = sbr.rel (0) target = $region9
  $region8: #{output_block_forward.1} parent=0 // pred_region
    _
  $region9: #{output_block_forward.1} parent=0 // pred_fallthru
    _
  // Predicated region
  $region10: #{output_block_forward.1} parent=0 // pred_check
    _
  $region11: #{output_block_forward.1} parent=0 // pred_check_branch
    %16 = sbr.rel (0) target = $region13
  $region12: #{output_block_forward.1} parent=0 // pred_region
    _
  $region13: #{output_block_forward.1} parent=0 // pred_fallthru
    _
  // Predicated region
  $region14: #{output_block_forward.1} parent=0 // pred_check
    _
  $region15: #{output_block_forward.1} parent=0 // pred_check_branch
    %18 = sbr.rel (0) target = $region17
  $region16: #{output_block_forward.1} parent=0 // pred_region
    _
  $region17: #{output_block_forward.1} parent=0 // pred_fallthru
    _
  // Predicated region
  $region18: #{output_block_forward.1} parent=0 // pred_check
    _
  $region19: #{output_block_forward.1} parent=0 // pred_check_branch
    %20 = sbr.rel (0) target = $region21
  $region20: #{output_block_forward.1} parent=0 // pred_region
    _
  $region21: #{output_block_forward.1} parent=0 // pred_fallthru
    _
  // Predicated region
  $region22: #{output_block_forward.1} parent=0 // pred_check
    _
  $region23: #{output_block_forward.1} parent=0 // pred_check_branch
    %22 = sbr.rel (0) target = $region25
  $region24: #{output_block_forward.1} parent=0 // pred_region
    _
  $region25: #{output_block_forward.1} parent=0 // pred_fallthru
    _
  %v23 = vld [vmem:[%s0] sm:$0xff]
  %v24 = vld [vmem:[%s0 + $0x8] sm:$0xff]
  %v25 = vld [vmem:[%s0 + $0x10] sm:$0xff]
  %v26 = vld [vmem:[%s0 + $0x18] sm:$0xff]
  %v27 = vld [vmem:[%s0 + $0x20] sm:$0xff]
  %v28 = vld [vmem:[%s0 + $0x28] sm:$0xff]
  %v29 = vld [vmem:[%s0 + $0x30] sm:$0xff]
  %v30 = vld [vmem:[%s0 + $0x38] sm:$0xff]
  %v31 = vld [vmem:[%s0 + $0x40] sm:$0xff]
  %v32 = vld [vmem:[%s0 + $0x48] sm:$0xff]
  %v33 = vld [vmem:[%s0 + $0x50] sm:$0xff]
  %v34 = vld [vmem:[%s0 + $0x58] sm:$0xff]
  %v35 = vld [vmem:[%s0 + $0x60] sm:$0xff]
  %v36 = vld [vmem:[%s0 + $0x68] sm:$0xff]
  %v37 = vld [vmem:[%s0 + $0x70] sm:$0xff]
  %v38 = vld [vmem:[%s0 + $0x78] sm:$0xff]
  %v39 = vld [vmem:[%s3] sm:$0xff]
  %v40 = vld [vmem:[%s3 + $0x8] sm:$0xff]
  %v41 = vld [vmem:[%s3 + $0x10] sm:$0xff]
  %v42 = vld [vmem:[%s3 + $0x18] sm:$0xff]
  %v43 = vld [vmem:[%s3 + $0x20] sm:$0xff]
  %v44 = vld [vmem:[%s3 + $0x28] sm:$0xff]
  %v45 = vld [vmem:[%s3 + $0x30] sm:$0xff]
  %v46 = vld [vmem:[%s3 + $0x38] sm:$0xff]
  %v47 = vld [vmem:[%s3 + $0x40] sm:$0xff]
  %v48 = vld [vmem:[%s3 + $0x48] sm:$0xff]
  %v49 = vld [vmem:[%s3 + $0x50] sm:$0xff]
  %v50 = vld [vmem:[%s3 + $0x58] sm:$0xff]
  %v51 = vld [vmem:[%s3 + $0x60] sm:$0xff]
  %v52 = vld [vmem:[%s3 + $0x68] sm:$0xff]
  %v53 = vld [vmem:[%s3 + $0x70] sm:$0xff]
  %v54 = vld [vmem:[%s3 + $0x78] sm:$0xff]
  %v55 = vld [vmem:[%s5] sm:$0x1]
  %v56 = vlaneseq
  %v57 = vshrl.u32 %v56, 7
  %v58 = vsub.s32 0, %v57
  %v59 = vrot.slane %v55, %v58
  %60 = vxpose.xlu0.b32.start [1/16] %v23, 128
  %61 = vxpose.xlu0.b32.cont [2/16] %v24, 128
  %62 = vxpose.xlu0.b32.cont [3/16] %v25, 128
  %63 = vxpose.xlu0.b32.cont [4/16] %v26, 128
  %64 = vxpose.xlu0.b32.cont [5/16] %v27, 128
  %65 = vxpose.xlu0.b32.cont [6/16] %v28, 128
  %66 = vxpose.xlu0.b32.cont [7/16] %v29, 128
  %67 = vxpose.xlu0.b32.cont [8/16] %v30, 128
  %68 = vxpose.xlu0.b32.cont [9/16] %v31, 128
  %69 = vxpose.xlu0.b32.cont [10/16] %v32, 128
  %70 = vxpose.xlu0.b32.cont [11/16] %v33, 128
  %71 = vxpose.xlu0.b32.cont [12/16] %v34, 128
  %72 = vxpose.xlu0.b32.cont [13/16] %v35, 128
  %73 = vxpose.xlu0.b32.cont [14/16] %v36, 128
  %74 = vxpose.xlu0.b32.cont [15/16] %v37, 128
  %75 = vxpose.xlu0.b32.end [16/16] %v38, 128
  %v76 = vpop.trf.xlu0
  %v77 = vpop.trf.xlu0
  %v78 = vpop.trf.xlu0
  %v79 = vpop.trf.xlu0
  %v80 = vpop.trf.xlu0
  %v81 = vpop.trf.xlu0
  %v82 = vpop.trf.xlu0
  %v83 = vpop.trf.xlu0
  %v84 = vpop.trf.xlu0
  %v85 = vpop.trf.xlu0
  %v86 = vpop.trf.xlu0
  %v87 = vpop.trf.xlu0
  %v88 = vpop.trf.xlu0
  %v89 = vpop.trf.xlu0
  %v90 = vpop.trf.xlu0
  %v91 = vpop.trf.xlu0
  %92 = vmatprep.subr.mxu0 0.0
  %93 = vmatpush1.msra.mxu0 %v39
  %94 = vmatprep.subr.mxu0 0.0
  %95 = vmatpush1.msra.mxu0 %v40
  %96 = vmatprep.subr.mxu0 0.0
  %97 = vmatpush1.msra.mxu0 %v41
  %98 = vmatprep.subr.mxu0 0.0
  %99 = vmatpush1.msra.mxu0 %v42
  %100 = vmatprep.subr.mxu0 0.0
  %101 = vmatpush1.msra.mxu0 %v43
  %102 = vmatprep.subr.mxu0 0.0
  %103 = vmatpush1.msra.mxu0 %v44
  %104 = vmatprep.subr.mxu0 0.0
  %105 = vmatpush1.msra.mxu0 %v45
  %106 = vmatprep.subr.mxu0 0.0
  %107 = vmatpush1.msra.mxu0 %v46
  %108 = vmatprep.subr.mxu0 0.0
  %109 = vmatpush1.msra.mxu0 %v47
  %110 = vmatprep.subr.mxu0 0.0
  %111 = vmatpush1.msra.mxu0 %v48
  %112 = vmatprep.subr.mxu0 0.0
  %113 = vmatpush1.msra.mxu0 %v49
  %114 = vmatprep.subr.mxu0 0.0
  %115 = vmatpush1.msra.mxu0 %v50
  %116 = vmatprep.subr.mxu0 0.0
  %117 = vmatpush1.msra.mxu0 %v51
  %118 = vmatprep.subr.mxu0 0.0
  %119 = vmatpush1.msra.mxu0 %v52
  %120 = vmatprep.subr.mxu0 0.0
  %121 = vmatpush1.msra.mxu0 %v53
  %122 = vmatprep.subr.mxu0 0.0
  %123 = vmatpush1.msra.mxu0 %v54
  %124 = vmatprep.subr.mxu0 0.0
  %125 = vmatpush1.msra.mxu0 0.0
  %126 = vmatprep.subr.mxu0 0.0
  %127 = vmatpush1.msra.mxu0 0.0
  %128 = vmatprep.subr.mxu0 0.0
  %129 = vmatpush1.msra.mxu0 0.0
  %130 = vmatprep.subr.mxu0 0.0
  %131 = vmatpush1.msra.mxu0 0.0
  %132 = vmatprep.subr.mxu0 0.0
  %133 = vmatpush1.msra.mxu0 0.0
  %134 = vmatprep.subr.mxu0 0.0
  %135 = vmatpush1.msra.mxu0 0.0
  %136 = vmatprep.subr.mxu0 0.0
  %137 = vmatpush1.msra.mxu0 0.0
  %138 = vmatprep.subr.mxu0 0.0
  %139 = vmatpush1.msra.mxu0 0.0
  %140 = vmatprep.subr.mxu0 0.0
  %141 = vmatpush1.msra.mxu0 0.0
  %142 = vmatprep.subr.mxu0 0.0
  %143 = vmatpush1.msra.mxu0 0.0
  %144 = vmatprep.subr.mxu0 0.0
  %145 = vmatpush1.msra.mxu0 0.0
  %146 = vmatprep.subr.mxu0 0.0
  %147 = vmatpush1.msra.mxu0 0.0
  %148 = vmatprep.subr.mxu0 0.0
  %149 = vmatpush1.msra.mxu0 0.0
  %150 = vmatprep.subr.mxu0 0.0
  %151 = vmatpush1.msra.mxu0 0.0
  %152 = vmatprep.subr.mxu0 0.0
  %153 = vmatpush1.msra.mxu0 0.0
  %154 = vmatprep.subr.mxu0 0.0
  %155 = vmatpush1.msra.mxu0 0.0
  %156 = vmatprep.mubr.f32.mxu0 0.0
  %157 = vmatmul.mubr.f32.gmra.mrb[0].mxu0 %v76
  %v158 = vpop.f32.mrb[0].mxu0
  %v159 = vadd.f32 %v59, %v158
  %v160 = vpop.f32.mrb[0].mxu0
  %161 = vmatprep.mubr.f32.mxu0 0.0
  %162 = vmatmul.mubr.f32.gmra.mrb[0].mxu0 %v77
  %v163 = vpop.f32.mrb[0].mxu0
  %v164 = vadd.f32 %v59, %v163
  %v165 = vpop.f32.mrb[0].mxu0
  %166 = vmatprep.mubr.f32.mxu0 0.0
  %167 = vmatmul.mubr.f32.gmra.mrb[0].mxu0 %v78
  %v168 = vpop.f32.mrb[0].mxu0
  %v169 = vadd.f32 %v59, %v168
  %v170 = vpop.f32.mrb[0].mxu0
  %171 = vmatprep.mubr.f32.mxu0 0.0
  %172 = vmatmul.mubr.f32.gmra.mrb[0].mxu0 %v79
  %v173 = vpop.f32.mrb[0].mxu0
  %v174 = vadd.f32 %v59, %v173
  %v175 = vpop.f32.mrb[0].mxu0
  %176 = vmatprep.mubr.f32.mxu0 0.0
  %177 = vmatmul.mubr.f32.gmra.mrb[0].mxu0 %v80
  %v178 = vpop.f32.mrb[0].mxu0
  %v179 = vadd.f32 %v59, %v178
  %v180 = vpop.f32.mrb[0].mxu0
  %181 = vmatprep.mubr.f32.mxu0 0.0
  %182 = vmatmul.mubr.f32.gmra.mrb[0].mxu0 %v81
  %v183 = vpop.f32.mrb[0].mxu0
  %v184 = vadd.f32 %v59, %v183
  %v185 = vpop.f32.mrb[0].mxu0
  %186 = vmatprep.mubr.f32.mxu0 0.0
  %187 = vmatmul.mubr.f32.gmra.mrb[0].mxu0 %v82
  %v188 = vpop.f32.mrb[0].mxu0
  %v189 = vadd.f32 %v59, %v188
  %v190 = vpop.f32.mrb[0].mxu0
  %191 = vmatprep.mubr.f32.mxu0 0.0
  %192 = vmatmul.mubr.f32.gmra.mrb[0].mxu0 %v83
  %v193 = vpop.f32.mrb[0].mxu0
  %v194 = vadd.f32 %v59, %v193
  %v195 = vpop.f32.mrb[0].mxu0
  %196 = vdwg.mxu0
  %197 = vst [vmem:[%s6] sm:$0xff] %v159
  %198 = vst [vmem:[%s6 + $0x8] sm:$0xff] %v164
  %199 = vst [vmem:[%s6 + $0x10] sm:$0xff] %v169
  %200 = vst [vmem:[%s6 + $0x18] sm:$0xff] %v174
  %201 = vst [vmem:[%s6 + $0x20] sm:$0xff] %v179
  %202 = vst [vmem:[%s6 + $0x28] sm:$0xff] %v184
  %203 = vst [vmem:[%s6 + $0x30] sm:$0xff] %v189
  %204 = vst [vmem:[%s6 + $0x38] sm:$0xff] %v194
  %s205 = scalar_lea.vmem %s0, 128
  %v206 = vld [vmem:[%s205] sm:$0xff]
  %v207 = vld [vmem:[%s205 + $0x8] sm:$0xff]
  %v208 = vld [vmem:[%s205 + $0x10] sm:$0xff]
  %v209 = vld [vmem:[%s205 + $0x18] sm:$0xff]
  %v210 = vld [vmem:[%s205 + $0x20] sm:$0xff]
  %v211 = vld [vmem:[%s205 + $0x28] sm:$0xff]
  %v212 = vld [vmem:[%s205 + $0x30] sm:$0xff]
  %v213 = vld [vmem:[%s205 + $0x38] sm:$0xff]
  %v214 = vld [vmem:[%s205 + $0x40] sm:$0xff]
  %v215 = vld [vmem:[%s205 + $0x48] sm:$0xff]
  %v216 = vld [vmem:[%s205 + $0x50] sm:$0xff]
  %v217 = vld [vmem:[%s205 + $0x58] sm:$0xff]
  %v218 = vld [vmem:[%s205 + $0x60] sm:$0xff]
  %v219 = vld [vmem:[%s205 + $0x68] sm:$0xff]
  %v220 = vld [vmem:[%s205 + $0x70] sm:$0xff]
  %v221 = vld [vmem:[%s205 + $0x78] sm:$0xff]
  %v222 = vld [vmem:[%s3] sm:$0xff]
  %v223 = vld [vmem:[%s3 + $0x8] sm:$0xff]
  %v224 = vld [vmem:[%s3 + $0x10] sm:$0xff]
  %v225 = vld [vmem:[%s3 + $0x18] sm:$0xff]
  %v226 = vld [vmem:[%s3 + $0x20] sm:$0xff]
  %v227 = vld [vmem:[%s3 + $0x28] sm:$0xff]
  %v228 = vld [vmem:[%s3 + $0x30] sm:$0xff]
  %v229 = vld [vmem:[%s3 + $0x38] sm:$0xff]
  %v230 = vld [vmem:[%s3 + $0x40] sm:$0xff]
  %v231 = vld [vmem:[%s3 + $0x48] sm:$0xff]
  %v232 = vld [vmem:[%s3 + $0x50] sm:$0xff]
  %v233 = vld [vmem:[%s3 + $0x58] sm:$0xff]
  %v234 = vld [vmem:[%s3 + $0x60] sm:$0xff]
  %v235 = vld [vmem:[%s3 + $0x68] sm:$0xff]
  %v236 = vld [vmem:[%s3 + $0x70] sm:$0xff]
  %v237 = vld [vmem:[%s3 + $0x78] sm:$0xff]
  %v238 = vld [vmem:[%s5] sm:$0x1]
  %v239 = vlaneseq
  %v240 = vshrl.u32 %v239, 7
  %v241 = vsub.s32 0, %v240
  %v242 = vrot.slane %v238, %v241
  %243 = vxpose.xlu0.b32.start [1/16] %v206, 128
  %244 = vxpose.xlu0.b32.cont [2/16] %v207, 128
  %245 = vxpose.xlu0.b32.cont [3/16] %v208, 128
  %246 = vxpose.xlu0.b32.cont [4/16] %v209, 128
  %247 = vxpose.xlu0.b32.cont [5/16] %v210, 128
  %248 = vxpose.xlu0.b32.cont [6/16] %v211, 128
  %249 = vxpose.xlu0.b32.cont [7/16] %v212, 128
  %250 = vxpose.xlu0.b32.cont [8/16] %v213, 128
  %251 = vxpose.xlu0.b32.cont [9/16] %v214, 128
  %252 = vxpose.xlu0.b32.cont [10/16] %v215, 128
  %253 = vxpose.xlu0.b32.cont [11/16] %v216, 128
  %254 = vxpose.xlu0.b32.cont [12/16] %v217, 128
  %255 = vxpose.xlu0.b32.cont [13/16] %v218, 128
  %256 = vxpose.xlu0.b32.cont [14/16] %v219, 128
  %257 = vxpose.xlu0.b32.cont [15/16] %v220, 128
  %258 = vxpose.xlu0.b32.end [16/16] %v221, 128
  %v259 = vpop.trf.xlu0
  %v260 = vpop.trf.xlu0
  %v261 = vpop.trf.xlu0
  %v262 = vpop.trf.xlu0
  %v263 = vpop.trf.xlu0
  %v264 = vpop.trf.xlu0
  %v265 = vpop.trf.xlu0
  %v266 = vpop.trf.xlu0
  %v267 = vpop.trf.xlu0
  %v268 = vpop.trf.xlu0
  %v269 = vpop.trf.xlu0
  %v270 = vpop.trf.xlu0
  %v271 = vpop.trf.xlu0
  %v272 = vpop.trf.xlu0
  %v273 = vpop.trf.xlu0
  %v274 = vpop.trf.xlu0
  %275 = vmatprep.subr.mxu0 0.0
  %276 = vmatpush1.msra.mxu0 %v222
  %277 = vmatprep.subr.mxu0 0.0
  %278 = vmatpush1.msra.mxu0 %v223
  %279 = vmatprep.subr.mxu0 0.0
  %280 = vmatpush1.msra.mxu0 %v224
  %281 = vmatprep.subr.mxu0 0.0
  %282 = vmatpush1.msra.mxu0 %v225
  %283 = vmatprep.subr.mxu0 0.0
  %284 = vmatpush1.msra.mxu0 %v226
  %285 = vmatprep.subr.mxu0 0.0
  %286 = vmatpush1.msra.mxu0 %v227
  %287 = vmatprep.subr.mxu0 0.0
  %288 = vmatpush1.msra.mxu0 %v228
  %289 = vmatprep.subr.mxu0 0.0
  %290 = vmatpush1.msra.mxu0 %v229
  %291 = vmatprep.subr.mxu0 0.0
  %292 = vmatpush1.msra.mxu0 %v230
  %293 = vmatprep.subr.mxu0 0.0
  %294 = vmatpush1.msra.mxu0 %v231
  %295 = vmatprep.subr.mxu0 0.0
  %296 = vmatpush1.msra.mxu0 %v232
  %297 = vmatprep.subr.mxu0 0.0
  %298 = vmatpush1.msra.mxu0 %v233
  %299 = vmatprep.subr.mxu0 0.0
  %300 = vmatpush1.msra.mxu0 %v234
  %301 = vmatprep.subr.mxu0 0.0
  %302 = vmatpush1.msra.mxu0 %v235
  %303 = vmatprep.subr.mxu0 0.0
  %304 = vmatpush1.msra.mxu0 %v236
  %305 = vmatprep.subr.mxu0 0.0
  %306 = vmatpush1.msra.mxu0 %v237
  %307 = vmatprep.subr.mxu0 0.0
  %308 = vmatpush1.msra.mxu0 0.0
  %309 = vmatprep.subr.mxu0 0.0
  %310 = vmatpush1.msra.mxu0 0.0
  %311 = vmatprep.subr.mxu0 0.0
  %312 = vmatpush1.msra.mxu0 0.0
  %313 = vmatprep.subr.mxu0 0.0
  %314 = vmatpush1.msra.mxu0 0.0
  %315 = vmatprep.subr.mxu0 0.0
  %316 = vmatpush1.msra.mxu0 0.0
  %317 = vmatprep.subr.mxu0 0.0
  %318 = vmatpush1.msra.mxu0 0.0
  %319 = vmatprep.subr.mxu0 0.0
  %320 = vmatpush1.msra.mxu0 0.0
  %321 = vmatprep.subr.mxu0 0.0
  %322 = vmatpush1.msra.mxu0 0.0
  %323 = vmatprep.subr.mxu0 0.0
  %324 = vmatpush1.msra.mxu0 0.0
  %325 = vmatprep.subr.mxu0 0.0
  %326 = vmatpush1.msra.mxu0 0.0
  %327 = vmatprep.subr.mxu0 0.0
  %328 = vmatpush1.msra.mxu0 0.0
  %329 = vmatprep.subr.mxu0 0.0
  %330 = vmatpush1.msra.mxu0 0.0
  %331 = vmatprep.subr.mxu0 0.0
  %332 = vmatpush1.msra.mxu0 0.0
  %333 = vmatprep.subr.mxu0 0.0
  %334 = vmatpush1.msra.mxu0 0.0
  %335 = vmatprep.subr.mxu0 0.0
  %336 = vmatpush1.msra.mxu0 0.0
  %337 = vmatprep.subr.mxu0 0.0
  %338 = vmatpush1.msra.mxu0 0.0
  %339 = vmatprep.mubr.f32.mxu0 0.0
  %340 = vmatmul.mubr.f32.gmra.mrb[0].mxu0 %v259
  %v341 = vpop.f32.mrb[0].mxu0
  %v342 = vadd.f32 %v242, %v341
  %v343 = vpop.f32.mrb[0].mxu0
  %344 = vmatprep.mubr.f32.mxu0 0.0
  %345 = vmatmul.mubr.f32.gmra.mrb[0].mxu0 %v260
  %v346 = vpop.f32.mrb[0].mxu0
  %v347 = vadd.f32 %v242, %v346
  %v348 = vpop.f32.mrb[0].mxu0
  %349 = vmatprep.mubr.f32.mxu0 0.0
  %350 = vmatmul.mubr.f32.gmra.mrb[0].mxu0 %v261
  %v351 = vpop.f32.mrb[0].mxu0
  %v352 = vadd.f32 %v242, %v351
  %v353 = vpop.f32.mrb[0].mxu0
  %354 = vmatprep.mubr.f32.mxu0 0.0
  %355 = vmatmul.mubr.f32.gmra.mrb[0].mxu0 %v262
  %v356 = vpop.f32.mrb[0].mxu0
  %v357 = vadd.f32 %v242, %v356
  %v358 = vpop.f32.mrb[0].mxu0
  %359 = vmatprep.mubr.f32.mxu0 0.0
  %360 = vmatmul.mubr.f32.gmra.mrb[0].mxu0 %v263
  %v361 = vpop.f32.mrb[0].mxu0
  %v362 = vadd.f32 %v242, %v361
  %v363 = vpop.f32.mrb[0].mxu0
  %364 = vmatprep.mubr.f32.mxu0 0.0
  %365 = vmatmul.mubr.f32.gmra.mrb[0].mxu0 %v264
  %v366 = vpop.f32.mrb[0].mxu0
  %v367 = vadd.f32 %v242, %v366
  %v368 = vpop.f32.mrb[0].mxu0
  %369 = vmatprep.mubr.f32.mxu0 0.0
  %370 = vmatmul.mubr.f32.gmra.mrb[0].mxu0 %v265
  %v371 = vpop.f32.mrb[0].mxu0
  %v372 = vadd.f32 %v242, %v371
  %v373 = vpop.f32.mrb[0].mxu0
  %374 = vmatprep.mubr.f32.mxu0 0.0
  %375 = vmatmul.mubr.f32.gmra.mrb[0].mxu0 %v266
  %v376 = vpop.f32.mrb[0].mxu0
  %v377 = vadd.f32 %v242, %v376
  %v378 = vpop.f32.mrb[0].mxu0
  %379 = vdwg.mxu0
  %380 = vst [vmem:[%s6 + $0x40] sm:$0xff] %v342
  %381 = vst [vmem:[%s6 + $0x48] sm:$0xff] %v347
  %382 = vst [vmem:[%s6 + $0x50] sm:$0xff] %v352
  %383 = vst [vmem:[%s6 + $0x58] sm:$0xff] %v357
  %384 = vst [vmem:[%s6 + $0x60] sm:$0xff] %v362
  %385 = vst [vmem:[%s6 + $0x68] sm:$0xff] %v367
  %386 = vst [vmem:[%s6 + $0x70] sm:$0xff] %v372
  %387 = vst [vmem:[%s6 + $0x78] sm:$0xff] %v377
  %v388 = vld [vmem:[%s1] sm:$0xff]
  %v389 = vld [vmem:[%s1 + $0x8] sm:$0xff]
  %v390 = vld [vmem:[%s1 + $0x10] sm:$0xff]
  %v391 = vld [vmem:[%s1 + $0x18] sm:$0xff]
  %v392 = vld [vmem:[%s1 + $0x20] sm:$0xff]
  %v393 = vld [vmem:[%s1 + $0x28] sm:$0xff]
  %v394 = vld [vmem:[%s1 + $0x30] sm:$0xff]
  %v395 = vld [vmem:[%s1 + $0x38] sm:$0xff]
  %v396 = vld [vmem:[%s1 + $0x40] sm:$0xff]
  %v397 = vld [vmem:[%s1 + $0x48] sm:$0xff]
  %v398 = vld [vmem:[%s1 + $0x50] sm:$0xff]
  %v399 = vld [vmem:[%s1 + $0x58] sm:$0xff]
  %v400 = vld [vmem:[%s1 + $0x60] sm:$0xff]
  %v401 = vld [vmem:[%s1 + $0x68] sm:$0xff]
  %v402 = vld [vmem:[%s1 + $0x70] sm:$0xff]
  %v403 = vld [vmem:[%s1 + $0x78] sm:$0xff]
  %v404 = vld [vmem:[%s1 + $0x80] sm:$0xff]
  %v405 = vld [vmem:[%s1 + $0x88] sm:$0xff]
  %v406 = vld [vmem:[%s1 + $0x90] sm:$0xff]
  %v407 = vld [vmem:[%s1 + $0x98] sm:$0xff]
  %v408 = vld [vmem:[%s1 + $0xa0] sm:$0xff]
  %v409 = vld [vmem:[%s1 + $0xa8] sm:$0xff]
  %v410 = vld [vmem:[%s1 + $0xb0] sm:$0xff]
  %v411 = vld [vmem:[%s1 + $0xb8] sm:$0xff]
  %v412 = vld [vmem:[%s1 + $0xc0] sm:$0xff]
  %v413 = vld [vmem:[%s1 + $0xc8] sm:$0xff]
  %v414 = vld [vmem:[%s1 + $0xd0] sm:$0xff]
  %v415 = vld [vmem:[%s1 + $0xd8] sm:$0xff]
  %v416 = vld [vmem:[%s1 + $0xe0] sm:$0xff]
  %v417 = vld [vmem:[%s1 + $0xe8] sm:$0xff]
  %v418 = vld [vmem:[%s1 + $0xf0] sm:$0xff]
  %v419 = vld [vmem:[%s1 + $0xf8] sm:$0xff]
  %v420 = vld [vmem:[%s4] sm:$0xff]
  %v421 = vld [vmem:[%s4 + $0x8] sm:$0xff]
  %v422 = vld [vmem:[%s4 + $0x10] sm:$0xff]
  %v423 = vld [vmem:[%s4 + $0x18] sm:$0xff]
  %v424 = vld [vmem:[%s4 + $0x20] sm:$0xff]
  %v425 = vld [vmem:[%s4 + $0x28] sm:$0xff]
  %v426 = vld [vmem:[%s4 + $0x30] sm:$0xff]
  %v427 = vld [vmem:[%s4 + $0x38] sm:$0xff]
  %v428 = vld [vmem:[%s4 + $0x40] sm:$0xff]
  %v429 = vld [vmem:[%s4 + $0x48] sm:$0xff]
  %v430 = vld [vmem:[%s4 + $0x50] sm:$0xff]
  %v431 = vld [vmem:[%s4 + $0x58] sm:$0xff]
  %v432 = vld [vmem:[%s4 + $0x60] sm:$0xff]
  %v433 = vld [vmem:[%s4 + $0x68] sm:$0xff]
  %v434 = vld [vmem:[%s4 + $0x70] sm:$0xff]
  %v435 = vld [vmem:[%s4 + $0x78] sm:$0xff]
  %v436 = vld [vmem:[%s4 + $0x80] sm:$0xff]
  %v437 = vld [vmem:[%s4 + $0x88] sm:$0xff]
  %v438 = vld [vmem:[%s4 + $0x90] sm:$0xff]
  %v439 = vld [vmem:[%s4 + $0x98] sm:$0xff]
  %v440 = vld [vmem:[%s4 + $0xa0] sm:$0xff]
  %v441 = vld [vmem:[%s4 + $0xa8] sm:$0xff]
  %v442 = vld [vmem:[%s4 + $0xb0] sm:$0xff]
  %v443 = vld [vmem:[%s4 + $0xb8] sm:$0xff]
  %v444 = vld [vmem:[%s4 + $0xc0] sm:$0xff]
  %v445 = vld [vmem:[%s4 + $0xc8] sm:$0xff]
  %v446 = vld [vmem:[%s4 + $0xd0] sm:$0xff]
  %v447 = vld [vmem:[%s4 + $0xd8] sm:$0xff]
  %v448 = vld [vmem:[%s4 + $0xe0] sm:$0xff]
  %v449 = vld [vmem:[%s4 + $0xe8] sm:$0xff]
  %v450 = vld [vmem:[%s4 + $0xf0] sm:$0xff]
  %v451 = vld [vmem:[%s4 + $0xf8] sm:$0xff]
  %v452 = vld [vmem:[%s5 + $0x1] sm:$0x1]
  %v453 = vlaneseq
  %v454 = vshrl.u32 %v453, 7
  %v455 = vsub.s32 0, %v454
  %v456 = vrot.slane %v452, %v455
  %457 = vxpose.xlu0.b32.start [1/16] %v388, 128
  %458 = vxpose.xlu0.b32.cont [2/16] %v389, 128
  %459 = vxpose.xlu0.b32.cont [3/16] %v390, 128
  %460 = vxpose.xlu0.b32.cont [4/16] %v391, 128
  %461 = vxpose.xlu0.b32.cont [5/16] %v392, 128
  %462 = vxpose.xlu0.b32.cont [6/16] %v393, 128
  %463 = vxpose.xlu0.b32.cont [7/16] %v394, 128
  %464 = vxpose.xlu0.b32.cont [8/16] %v395, 128
  %465 = vxpose.xlu0.b32.cont [9/16] %v396, 128
  %466 = vxpose.xlu0.b32.cont [10/16] %v397, 128
  %467 = vxpose.xlu0.b32.cont [11/16] %v398, 128
  %468 = vxpose.xlu0.b32.cont [12/16] %v399, 128
  %469 = vxpose.xlu0.b32.cont [13/16] %v400, 128
  %470 = vxpose.xlu0.b32.cont [14/16] %v401, 128
  %471 = vxpose.xlu0.b32.cont [15/16] %v402, 128
  %472 = vxpose.xlu0.b32.end [16/16] %v403, 128
  %v473 = vpop.trf.xlu0
  %v474 = vpop.trf.xlu0
  %v475 = vpop.trf.xlu0
  %v476 = vpop.trf.xlu0
  %v477 = vpop.trf.xlu0
  %v478 = vpop.trf.xlu0
  %v479 = vpop.trf.xlu0
  %v480 = vpop.trf.xlu0
  %v481 = vpop.trf.xlu0
  %v482 = vpop.trf.xlu0
  %v483 = vpop.trf.xlu0
  %v484 = vpop.trf.xlu0
  %v485 = vpop.trf.xlu0
  %v486 = vpop.trf.xlu0
  %v487 = vpop.trf.xlu0
  %v488 = vpop.trf.xlu0
  %489 = vxpose.xlu0.b32.start [1/16] %v404, 128
  %490 = vxpose.xlu0.b32.cont [2/16] %v405, 128
  %491 = vxpose.xlu0.b32.cont [3/16] %v406, 128
  %492 = vxpose.xlu0.b32.cont [4/16] %v407, 128
  %493 = vxpose.xlu0.b32.cont [5/16] %v408, 128
  %494 = vxpose.xlu0.b32.cont [6/16] %v409, 128
  %495 = vxpose.xlu0.b32.cont [7/16] %v410, 128
  %496 = vxpose.xlu0.b32.cont [8/16] %v411, 128
  %497 = vxpose.xlu0.b32.cont [9/16] %v412, 128
  %498 = vxpose.xlu0.b32.cont [10/16] %v413, 128
  %499 = vxpose.xlu0.b32.cont [11/16] %v414, 128
  %500 = vxpose.xlu0.b32.cont [12/16] %v415, 128
  %501 = vxpose.xlu0.b32.cont [13/16] %v416, 128
  %502 = vxpose.xlu0.b32.cont [14/16] %v417, 128
  %503 = vxpose.xlu0.b32.cont [15/16] %v418, 128
  %504 = vxpose.xlu0.b32.end [16/16] %v419, 128
  %v505 = vpop.trf.xlu0
  %v506 = vpop.trf.xlu0
  %v507 = vpop.trf.xlu0
  %v508 = vpop.trf.xlu0
  %v509 = vpop.trf.xlu0
  %v510 = vpop.trf.xlu0
  %v511 = vpop.trf.xlu0
  %v512 = vpop.trf.xlu0
  %v513 = vpop.trf.xlu0
  %v514 = vpop.trf.xlu0
  %v515 = vpop.trf.xlu0
  %v516 = vpop.trf.xlu0
  %v517 = vpop.trf.xlu0
  %v518 = vpop.trf.xlu0
  %v519 = vpop.trf.xlu0
  %v520 = vpop.trf.xlu0
  %521 = vmatprep.subr.mxu0 0.0
  %522 = vmatpush1.msra.mxu0 %v420
  %523 = vmatprep.subr.mxu0 0.0
  %524 = vmatpush1.msra.mxu0 %v421
  %525 = vmatprep.subr.mxu0 0.0
  %526 = vmatpush1.msra.mxu0 %v422
  %527 = vmatprep.subr.mxu0 0.0
  %528 = vmatpush1.msra.mxu0 %v423
  %529 = vmatprep.subr.mxu0 0.0
  %530 = vmatpush1.msra.mxu0 %v424
  %531 = vmatprep.subr.mxu0 0.0
  %532 = vmatpush1.msra.mxu0 %v425
  %533 = vmatprep.subr.mxu0 0.0
  %534 = vmatpush1.msra.mxu0 %v426
  %535 = vmatprep.subr.mxu0 0.0
  %536 = vmatpush1.msra.mxu0 %v427
  %537 = vmatprep.subr.mxu0 0.0
  %538 = vmatpush1.msra.mxu0 %v428
  %539 = vmatprep.subr.mxu0 0.0
  %540 = vmatpush1.msra.mxu0 %v429
  %541 = vmatprep.subr.mxu0 0.0
  %542 = vmatpush1.msra.mxu0 %v430
  %543 = vmatprep.subr.mxu0 0.0
  %544 = vmatpush1.msra.mxu0 %v431
  %545 = vmatprep.subr.mxu0 0.0
  %546 = vmatpush1.msra.mxu0 %v432
  %547 = vmatprep.subr.mxu0 0.0
  %548 = vmatpush1.msra.mxu0 %v433
  %549 = vmatprep.subr.mxu0 0.0
  %550 = vmatpush1.msra.mxu0 %v434
  %551 = vmatprep.subr.mxu0 0.0
  %552 = vmatpush1.msra.mxu0 %v435
  %553 = vmatprep.subr.mxu0 0.0
  %554 = vmatpush1.msra.mxu0 %v436
  %555 = vmatprep.subr.mxu0 0.0
  %556 = vmatpush1.msra.mxu0 %v437
  %557 = vmatprep.subr.mxu0 0.0
  %558 = vmatpush1.msra.mxu0 %v438
  %559 = vmatprep.subr.mxu0 0.0
  %560 = vmatpush1.msra.mxu0 %v439
  %561 = vmatprep.subr.mxu0 0.0
  %562 = vmatpush1.msra.mxu0 %v440
  %563 = vmatprep.subr.mxu0 0.0
  %564 = vmatpush1.msra.mxu0 %v441
  %565 = vmatprep.subr.mxu0 0.0
  %566 = vmatpush1.msra.mxu0 %v442
  %567 = vmatprep.subr.mxu0 0.0
  %568 = vmatpush1.msra.mxu0 %v443
  %569 = vmatprep.subr.mxu0 0.0
  %570 = vmatpush1.msra.mxu0 %v444
  %571 = vmatprep.subr.mxu0 0.0
  %572 = vmatpush1.msra.mxu0 %v445
  %573 = vmatprep.subr.mxu0 0.0
  %574 = vmatpush1.msra.mxu0 %v446
  %575 = vmatprep.subr.mxu0 0.0
  %576 = vmatpush1.msra.mxu0 %v447
  %577 = vmatprep.subr.mxu0 0.0
  %578 = vmatpush1.msra.mxu0 %v448
  %579 = vmatprep.subr.mxu0 0.0
  %580 = vmatpush1.msra.mxu0 %v449
  %581 = vmatprep.subr.mxu0 0.0
  %582 = vmatpush1.msra.mxu0 %v450
  %583 = vmatprep.subr.mxu0 0.0
  %584 = vmatpush1.msra.mxu0 %v451
  %585 = vmatprep.mubr.f32.mxu0 %v505
  %586 = vmatmul.mubr.f32.gmra.mrb[0].mxu0 %v473
  %v587 = vpop.f32.mrb[0].mxu0
  %v588 = vadd.f32 %v456, %v587
  %v589 = vpop.f32.mrb[0].mxu0
  %590 = vmatprep.mubr.f32.mxu0 %v506
  %591 = vmatmul.mubr.f32.gmra.mrb[0].mxu0 %v474
  %v592 = vpop.f32.mrb[0].mxu0
  %v593 = vadd.f32 %v456, %v592
  %v594 = vpop.f32.mrb[0].mxu0
  %595 = vdwg.mxu0
  %596 = vst [vmem:[%s6 + $0x80] sm:$0xff] %v588
  %597 = vst [vmem:[%s6 + $0x88] sm:$0xff] %v593
  %s598 = scalar_lea.vmem %s1, 256
  %v599 = vld [vmem:[%s598] sm:$0xff]
  %v600 = vld [vmem:[%s598 + $0x8] sm:$0xff]
  %v601 = vld [vmem:[%s598 + $0x10] sm:$0xff]
  %v602 = vld [vmem:[%s598 + $0x18] sm:$0xff]
  %v603 = vld [vmem:[%s598 + $0x20] sm:$0xff]
  %v604 = vld [vmem:[%s598 + $0x28] sm:$0xff]
  %v605 = vld [vmem:[%s598 + $0x30] sm:$0xff]
  %v606 = vld [vmem:[%s598 + $0x38] sm:$0xff]
  %v607 = vld [vmem:[%s598 + $0x40] sm:$0xff]
  %v608 = vld [vmem:[%s598 + $0x48] sm:$0xff]
  %v609 = vld [vmem:[%s598 + $0x50] sm:$0xff]
  %v610 = vld [vmem:[%s598 + $0x58] sm:$0xff]
  %v611 = vld [vmem:[%s598 + $0x60] sm:$0xff]
  %v612 = vld [vmem:[%s598 + $0x68] sm:$0xff]
  %v613 = vld [vmem:[%s598 + $0x70] sm:$0xff]
  %v614 = vld [vmem:[%s598 + $0x78] sm:$0xff]
  %v615 = vld [vmem:[%s598 + $0x80] sm:$0xff]
  %v616 = vld [vmem:[%s598 + $0x88] sm:$0xff]
  %v617 = vld [vmem:[%s598 + $0x90] sm:$0xff]
  %v618 = vld [vmem:[%s598 + $0x98] sm:$0xff]
  %v619 = vld [vmem:[%s598 + $0xa0] sm:$0xff]
  %v620 = vld [vmem:[%s598 + $0xa8] sm:$0xff]
  %v621 = vld [vmem:[%s598 + $0xb0] sm:$0xff]
  %v622 = vld [vmem:[%s598 + $0xb8] sm:$0xff]
  %v623 = vld [vmem:[%s598 + $0xc0] sm:$0xff]
  %v624 = vld [vmem:[%s598 + $0xc8] sm:$0xff]
  %v625 = vld [vmem:[%s598 + $0xd0] sm:$0xff]
  %v626 = vld [vmem:[%s598 + $0xd8] sm:$0xff]
  %v627 = vld [vmem:[%s598 + $0xe0] sm:$0xff]
  %v628 = vld [vmem:[%s598 + $0xe8] sm:$0xff]
  %v629 = vld [vmem:[%s598 + $0xf0] sm:$0xff]
  %v630 = vld [vmem:[%s598 + $0xf8] sm:$0xff]
  %v631 = vld [vmem:[%s4] sm:$0xff]
  %v632 = vld [vmem:[%s4 + $0x8] sm:$0xff]
  %v633 = vld [vmem:[%s4 + $0x10] sm:$0xff]
  %v634 = vld [vmem:[%s4 + $0x18] sm:$0xff]
  %v635 = vld [vmem:[%s4 + $0x20] sm:$0xff]
  %v636 = vld [vmem:[%s4 + $0x28] sm:$0xff]
  %v637 = vld [vmem:[%s4 + $0x30] sm:$0xff]
  %v638 = vld [vmem:[%s4 + $0x38] sm:$0xff]
  %v639 = vld [vmem:[%s4 + $0x40] sm:$0xff]
  %v640 = vld [vmem:[%s4 + $0x48] sm:$0xff]
  %v641 = vld [vmem:[%s4 + $0x50] sm:$0xff]
  %v642 = vld [vmem:[%s4 + $0x58] sm:$0xff]
  %v643 = vld [vmem:[%s4 + $0x60] sm:$0xff]
  %v644 = vld [vmem:[%s4 + $0x68] sm:$0xff]
  %v645 = vld [vmem:[%s4 + $0x70] sm:$0xff]
  %v646 = vld [vmem:[%s4 + $0x78] sm:$0xff]
  %v647 = vld [vmem:[%s4 + $0x80] sm:$0xff]
  %v648 = vld [vmem:[%s4 + $0x88] sm:$0xff]
  %v649 = vld [vmem:[%s4 + $0x90] sm:$0xff]
  %v650 = vld [vmem:[%s4 + $0x98] sm:$0xff]
  %v651 = vld [vmem:[%s4 + $0xa0] sm:$0xff]
  %v652 = vld [vmem:[%s4 + $0xa8] sm:$0xff]
  %v653 = vld [vmem:[%s4 + $0xb0] sm:$0xff]
  %v654 = vld [vmem:[%s4 + $0xb8] sm:$0xff]
  %v655 = vld [vmem:[%s4 + $0xc0] sm:$0xff]
  %v656 = vld [vmem:[%s4 + $0xc8] sm:$0xff]
  %v657 = vld [vmem:[%s4 + $0xd0] sm:$0xff]
  %v658 = vld [vmem:[%s4 + $0xd8] sm:$0xff]
  %v659 = vld [vmem:[%s4 + $0xe0] sm:$0xff]
  %v660 = vld [vmem:[%s4 + $0xe8] sm:$0xff]
  %v661 = vld [vmem:[%s4 + $0xf0] sm:$0xff]
  %v662 = vld [vmem:[%s4 + $0xf8] sm:$0xff]
  %v663 = vld [vmem:[%s5 + $0x1] sm:$0x1]
  %v664 = vlaneseq
  %v665 = vshrl.u32 %v664, 7
  %v666 = vsub.s32 0, %v665
  %v667 = vrot.slane %v663, %v666
  %668 = vxpose.xlu0.b32.start [1/16] %v599, 128
  %669 = vxpose.xlu0.b32.cont [2/16] %v600, 128
  %670 = vxpose.xlu0.b32.cont [3/16] %v601, 128
  %671 = vxpose.xlu0.b32.cont [4/16] %v602, 128
  %672 = vxpose.xlu0.b32.cont [5/16] %v603, 128
  %673 = vxpose.xlu0.b32.cont [6/16] %v604, 128
  %674 = vxpose.xlu0.b32.cont [7/16] %v605, 128
  %675 = vxpose.xlu0.b32.cont [8/16] %v606, 128
  %676 = vxpose.xlu0.b32.cont [9/16] %v607, 128
  %677 = vxpose.xlu0.b32.cont [10/16] %v608, 128
  %678 = vxpose.xlu0.b32.cont [11/16] %v609, 128
  %679 = vxpose.xlu0.b32.cont [12/16] %v610, 128
  %680 = vxpose.xlu0.b32.cont [13/16] %v611, 128
  %681 = vxpose.xlu0.b32.cont [14/16] %v612, 128
  %682 = vxpose.xlu0.b32.cont [15/16] %v613, 128
  %683 = vxpose.xlu0.b32.end [16/16] %v614, 128
  %v684 = vpop.trf.xlu0
  %v685 = vpop.trf.xlu0
  %v686 = vpop.trf.xlu0
  %v687 = vpop.trf.xlu0
  %v688 = vpop.trf.xlu0
  %v689 = vpop.trf.xlu0
  %v690 = vpop.trf.xlu0
  %v691 = vpop.trf.xlu0
  %v692 = vpop.trf.xlu0
  %v693 = vpop.trf.xlu0
  %v694 = vpop.trf.xlu0
  %v695 = vpop.trf.xlu0
  %v696 = vpop.trf.xlu0
  %v697 = vpop.trf.xlu0
  %v698 = vpop.trf.xlu0
  %v699 = vpop.trf.xlu0
  %700 = vxpose.xlu0.b32.start [1/16] %v615, 128
  %701 = vxpose.xlu0.b32.cont [2/16] %v616, 128
  %702 = vxpose.xlu0.b32.cont [3/16] %v617, 128
  %703 = vxpose.xlu0.b32.cont [4/16] %v618, 128
  %704 = vxpose.xlu0.b32.cont [5/16] %v619, 128
  %705 = vxpose.xlu0.b32.cont [6/16] %v620, 128
  %706 = vxpose.xlu0.b32.cont [7/16] %v621, 128
  %707 = vxpose.xlu0.b32.cont [8/16] %v622, 128
  %708 = vxpose.xlu0.b32.cont [9/16] %v623, 128
  %709 = vxpose.xlu0.b32.cont [10/16] %v624, 128
  %710 = vxpose.xlu0.b32.cont [11/16] %v625, 128
  %711 = vxpose.xlu0.b32.cont [12/16] %v626, 128
  %712 = vxpose.xlu0.b32.cont [13/16] %v627, 128
  %713 = vxpose.xlu0.b32.cont [14/16] %v628, 128
  %714 = vxpose.xlu0.b32.cont [15/16] %v629, 128
  %715 = vxpose.xlu0.b32.end [16/16] %v630, 128
  %v716 = vpop.trf.xlu0
  %v717 = vpop.trf.xlu0
  %v718 = vpop.trf.xlu0
  %v719 = vpop.trf.xlu0
  %v720 = vpop.trf.xlu0
  %v721 = vpop.trf.xlu0
  %v722 = vpop.trf.xlu0
  %v723 = vpop.trf.xlu0
  %v724 = vpop.trf.xlu0
  %v725 = vpop.trf.xlu0
  %v726 = vpop.trf.xlu0
  %v727 = vpop.trf.xlu0
  %v728 = vpop.trf.xlu0
  %v729 = vpop.trf.xlu0
  %v730 = vpop.trf.xlu0
  %v731 = vpop.trf.xlu0
  %732 = vmatprep.subr.mxu0 0.0
  %733 = vmatpush1.msra.mxu0 %v631
  %734 = vmatprep.subr.mxu0 0.0
  %735 = vmatpush1.msra.mxu0 %v632
  %736 = vmatprep.subr.mxu0 0.0
  %737 = vmatpush1.msra.mxu0 %v633
  %738 = vmatprep.subr.mxu0 0.0
  %739 = vmatpush1.msra.mxu0 %v634
  %740 = vmatprep.subr.mxu0 0.0
  %741 = vmatpush1.msra.mxu0 %v635
  %742 = vmatprep.subr.mxu0 0.0
  %743 = vmatpush1.msra.mxu0 %v636
  %744 = vmatprep.subr.mxu0 0.0
  %745 = vmatpush1.msra.mxu0 %v637
  %746 = vmatprep.subr.mxu0 0.0
  %747 = vmatpush1.msra.mxu0 %v638
  %748 = vmatprep.subr.mxu0 0.0
  %749 = vmatpush1.msra.mxu0 %v639
  %750 = vmatprep.subr.mxu0 0.0
  %751 = vmatpush1.msra.mxu0 %v640
  %752 = vmatprep.subr.mxu0 0.0
  %753 = vmatpush1.msra.mxu0 %v641
  %754 = vmatprep.subr.mxu0 0.0
  %755 = vmatpush1.msra.mxu0 %v642
  %756 = vmatprep.subr.mxu0 0.0
  %757 = vmatpush1.msra.mxu0 %v643
  %758 = vmatprep.subr.mxu0 0.0
  %759 = vmatpush1.msra.mxu0 %v644
  %760 = vmatprep.subr.mxu0 0.0
  %761 = vmatpush1.msra.mxu0 %v645
  %762 = vmatprep.subr.mxu0 0.0
  %763 = vmatpush1.msra.mxu0 %v646
  %764 = vmatprep.subr.mxu0 0.0
  %765 = vmatpush1.msra.mxu0 %v647
  %766 = vmatprep.subr.mxu0 0.0
  %767 = vmatpush1.msra.mxu0 %v648
  %768 = vmatprep.subr.mxu0 0.0
  %769 = vmatpush1.msra.mxu0 %v649
  %770 = vmatprep.subr.mxu0 0.0
  %771 = vmatpush1.msra.mxu0 %v650
  %772 = vmatprep.subr.mxu0 0.0
  %773 = vmatpush1.msra.mxu0 %v651
  %774 = vmatprep.subr.mxu0 0.0
  %775 = vmatpush1.msra.mxu0 %v652
  %776 = vmatprep.subr.mxu0 0.0
  %777 = vmatpush1.msra.mxu0 %v653
  %778 = vmatprep.subr.mxu0 0.0
  %779 = vmatpush1.msra.mxu0 %v654
  %780 = vmatprep.subr.mxu0 0.0
  %781 = vmatpush1.msra.mxu0 %v655
  %782 = vmatprep.subr.mxu0 0.0
  %783 = vmatpush1.msra.mxu0 %v656
  %784 = vmatprep.subr.mxu0 0.0
  %785 = vmatpush1.msra.mxu0 %v657
  %786 = vmatprep.subr.mxu0 0.0
  %787 = vmatpush1.msra.mxu0 %v658
  %788 = vmatprep.subr.mxu0 0.0
  %789 = vmatpush1.msra.mxu0 %v659
  %790 = vmatprep.subr.mxu0 0.0
  %791 = vmatpush1.msra.mxu0 %v660
  %792 = vmatprep.subr.mxu0 0.0
  %793 = vmatpush1.msra.mxu0 %v661
  %794 = vmatprep.subr.mxu0 0.0
  %795 = vmatpush1.msra.mxu0 %v662
  %796 = vmatprep.mubr.f32.mxu0 %v716
  %797 = vmatmul.mubr.f32.gmra.mrb[0].mxu0 %v684
  %v798 = vpop.f32.mrb[0].mxu0
  %v799 = vadd.f32 %v667, %v798
  %v800 = vpop.f32.mrb[0].mxu0
  %801 = vmatprep.mubr.f32.mxu0 %v717
  %802 = vmatmul.mubr.f32.gmra.mrb[0].mxu0 %v685
  %v803 = vpop.f32.mrb[0].mxu0
  %v804 = vadd.f32 %v667, %v803
  %v805 = vpop.f32.mrb[0].mxu0
  %806 = vdwg.mxu0
  %807 = vst [vmem:[%s6 + $0x90] sm:$0xff] %v799
  %808 = vst [vmem:[%s6 + $0x98] sm:$0xff] %v804
  %v809 = vld [vmem:[%s2] sm:$0xff]
  %v810 = vld [vmem:[%s2 + $0x8] sm:$0xff]
  %v811 = vld [vmem:[%s2 + $0x10] sm:$0xff]
  %v812 = vld [vmem:[%s2 + $0x18] sm:$0xff]
  %v813 = vld [vmem:[%s2 + $0x20] sm:$0xff]
  %v814 = vld [vmem:[%s2 + $0x28] sm:$0xff]
  %v815 = vld [vmem:[%s2 + $0x30] sm:$0xff]
  %v816 = vld [vmem:[%s2 + $0x38] sm:$0xff]
  %v817 = vld [vmem:[%s2 + $0x40] sm:$0xff]
  %v818 = vld [vmem:[%s2 + $0x48] sm:$0xff]
  %v819 = vld [vmem:[%s2 + $0x50] sm:$0xff]
  %v820 = vld [vmem:[%s2 + $0x58] sm:$0xff]
  %v821 = vld [vmem:[%s2 + $0x60] sm:$0xff]
  %v822 = vld [vmem:[%s2 + $0x68] sm:$0xff]
  %v823 = vld [vmem:[%s2 + $0x70] sm:$0xff]
  %v824 = vld [vmem:[%s2 + $0x78] sm:$0xff]
  %v825 = vld [vmem:[%s2 + $0x80] sm:$0xff]
  %v826 = vld [vmem:[%s2 + $0x88] sm:$0xff]
  %v827 = vld [vmem:[%s2 + $0x90] sm:$0xff]
  %v828 = vld [vmem:[%s2 + $0x98] sm:$0xff]
  %v829 = vld [vmem:[%s2 + $0xa0] sm:$0xff]
  %v830 = vld [vmem:[%s2 + $0xa8] sm:$0xff]
  %v831 = vld [vmem:[%s2 + $0xb0] sm:$0xff]
  %v832 = vld [vmem:[%s2 + $0xb8] sm:$0xff]
  %v833 = vld [vmem:[%s2 + $0xc0] sm:$0xff]
  %v834 = vld [vmem:[%s2 + $0xc8] sm:$0xff]
  %v835 = vld [vmem:[%s2 + $0xd0] sm:$0xff]
  %v836 = vld [vmem:[%s2 + $0xd8] sm:$0xff]
  %v837 = vld [vmem:[%s2 + $0xe0] sm:$0xff]
  %v838 = vld [vmem:[%s2 + $0xe8] sm:$0xff]
  %v839 = vld [vmem:[%s2 + $0xf0] sm:$0xff]
  %v840 = vld [vmem:[%s2 + $0xf8] sm:$0xff]
  %v841 = vld [vmem:[%s4] sm:$0xff]
  %v842 = vld [vmem:[%s4 + $0x8] sm:$0xff]
  %v843 = vld [vmem:[%s4 + $0x10] sm:$0xff]
  %v844 = vld [vmem:[%s4 + $0x18] sm:$0xff]
  %v845 = vld [vmem:[%s4 + $0x20] sm:$0xff]
  %v846 = vld [vmem:[%s4 + $0x28] sm:$0xff]
  %v847 = vld [vmem:[%s4 + $0x30] sm:$0xff]
  %v848 = vld [vmem:[%s4 + $0x38] sm:$0xff]
  %v849 = vld [vmem:[%s4 + $0x40] sm:$0xff]
  %v850 = vld [vmem:[%s4 + $0x48] sm:$0xff]
  %v851 = vld [vmem:[%s4 + $0x50] sm:$0xff]
  %v852 = vld [vmem:[%s4 + $0x58] sm:$0xff]
  %v853 = vld [vmem:[%s4 + $0x60] sm:$0xff]
  %v854 = vld [vmem:[%s4 + $0x68] sm:$0xff]
  %v855 = vld [vmem:[%s4 + $0x70] sm:$0xff]
  %v856 = vld [vmem:[%s4 + $0x78] sm:$0xff]
  %v857 = vld [vmem:[%s4 + $0x80] sm:$0xff]
  %v858 = vld [vmem:[%s4 + $0x88] sm:$0xff]
  %v859 = vld [vmem:[%s4 + $0x90] sm:$0xff]
  %v860 = vld [vmem:[%s4 + $0x98] sm:$0xff]
  %v861 = vld [vmem:[%s4 + $0xa0] sm:$0xff]
  %v862 = vld [vmem:[%s4 + $0xa8] sm:$0xff]
  %v863 = vld [vmem:[%s4 + $0xb0] sm:$0xff]
  %v864 = vld [vmem:[%s4 + $0xb8] sm:$0xff]
  %v865 = vld [vmem:[%s4 + $0xc0] sm:$0xff]
  %v866 = vld [vmem:[%s4 + $0xc8] sm:$0xff]
  %v867 = vld [vmem:[%s4 + $0xd0] sm:$0xff]
  %v868 = vld [vmem:[%s4 + $0xd8] sm:$0xff]
  %v869 = vld [vmem:[%s4 + $0xe0] sm:$0xff]
  %v870 = vld [vmem:[%s4 + $0xe8] sm:$0xff]
  %v871 = vld [vmem:[%s4 + $0xf0] sm:$0xff]
  %v872 = vld [vmem:[%s4 + $0xf8] sm:$0xff]
  %v873 = vld [vmem:[%s5 + $0x1] sm:$0x1]
  %v874 = vlaneseq
  %v875 = vshrl.u32 %v874, 7
  %v876 = vsub.s32 0, %v875
  %v877 = vrot.slane %v873, %v876
  %878 = vxpose.xlu0.b32.start [1/16] %v809, 128
  %879 = vxpose.xlu0.b32.cont [2/16] %v810, 128
  %880 = vxpose.xlu0.b32.cont [3/16] %v811, 128
  %881 = vxpose.xlu0.b32.cont [4/16] %v812, 128
  %882 = vxpose.xlu0.b32.cont [5/16] %v813, 128
  %883 = vxpose.xlu0.b32.cont [6/16] %v814, 128
  %884 = vxpose.xlu0.b32.cont [7/16] %v815, 128
  %885 = vxpose.xlu0.b32.cont [8/16] %v816, 128
  %886 = vxpose.xlu0.b32.cont [9/16] %v817, 128
  %887 = vxpose.xlu0.b32.cont [10/16] %v818, 128
  %888 = vxpose.xlu0.b32.cont [11/16] %v819, 128
  %889 = vxpose.xlu0.b32.cont [12/16] %v820, 128
  %890 = vxpose.xlu0.b32.cont [13/16] %v821, 128
  %891 = vxpose.xlu0.b32.cont [14/16] %v822, 128
  %892 = vxpose.xlu0.b32.cont [15/16] %v823, 128
  %893 = vxpose.xlu0.b32.end [16/16] %v824, 128
  %v894 = vpop.trf.xlu0
  %v895 = vpop.trf.xlu0
  %v896 = vpop.trf.xlu0
  %v897 = vpop.trf.xlu0
  %v898 = vpop.trf.xlu0
  %v899 = vpop.trf.xlu0
  %v900 = vpop.trf.xlu0
  %v901 = vpop.trf.xlu0
  %v902 = vpop.trf.xlu0
  %v903 = vpop.trf.xlu0
  %v904 = vpop.trf.xlu0
  %v905 = vpop.trf.xlu0
  %v906 = vpop.trf.xlu0
  %v907 = vpop.trf.xlu0
  %v908 = vpop.trf.xlu0
  %v909 = vpop.trf.xlu0
  %910 = vxpose.xlu0.b32.start [1/16] %v825, 128
  %911 = vxpose.xlu0.b32.cont [2/16] %v826, 128
  %912 = vxpose.xlu0.b32.cont [3/16] %v827, 128
  %913 = vxpose.xlu0.b32.cont [4/16] %v828, 128
  %914 = vxpose.xlu0.b32.cont [5/16] %v829, 128
  %915 = vxpose.xlu0.b32.cont [6/16] %v830, 128
  %916 = vxpose.xlu0.b32.cont [7/16] %v831, 128
  %917 = vxpose.xlu0.b32.cont [8/16] %v832, 128
  %918 = vxpose.xlu0.b32.cont [9/16] %v833, 128
  %919 = vxpose.xlu0.b32.cont [10/16] %v834, 128
  %920 = vxpose.xlu0.b32.cont [11/16] %v835, 128
  %921 = vxpose.xlu0.b32.cont [12/16] %v836, 128
  %922 = vxpose.xlu0.b32.cont [13/16] %v837, 128
  %923 = vxpose.xlu0.b32.cont [14/16] %v838, 128
  %924 = vxpose.xlu0.b32.cont [15/16] %v839, 128
  %925 = vxpose.xlu0.b32.end [16/16] %v840, 128
  %v926 = vpop.trf.xlu0
  %v927 = vpop.trf.xlu0
  %v928 = vpop.trf.xlu0
  %v929 = vpop.trf.xlu0
  %v930 = vpop.trf.xlu0
  %v931 = vpop.trf.xlu0
  %v932 = vpop.trf.xlu0
  %v933 = vpop.trf.xlu0
  %v934 = vpop.trf.xlu0
  %v935 = vpop.trf.xlu0
  %v936 = vpop.trf.xlu0
  %v937 = vpop.trf.xlu0
  %v938 = vpop.trf.xlu0
  %v939 = vpop.trf.xlu0
  %v940 = vpop.trf.xlu0
  %v941 = vpop.trf.xlu0
  %942 = vmatprep.subr.mxu0 0.0
  %943 = vmatpush1.msra.mxu0 %v841
  %944 = vmatprep.subr.mxu0 0.0
  %945 = vmatpush1.msra.mxu0 %v842
  %946 = vmatprep.subr.mxu0 0.0
  %947 = vmatpush1.msra.mxu0 %v843
  %948 = vmatprep.subr.mxu0 0.0
  %949 = vmatpush1.msra.mxu0 %v844
  %950 = vmatprep.subr.mxu0 0.0
  %951 = vmatpush1.msra.mxu0 %v845
  %952 = vmatprep.subr.mxu0 0.0
  %953 = vmatpush1.msra.mxu0 %v846
  %954 = vmatprep.subr.mxu0 0.0
  %955 = vmatpush1.msra.mxu0 %v847
  %956 = vmatprep.subr.mxu0 0.0
  %957 = vmatpush1.msra.mxu0 %v848
  %958 = vmatprep.subr.mxu0 0.0
  %959 = vmatpush1.msra.mxu0 %v849
  %960 = vmatprep.subr.mxu0 0.0
  %961 = vmatpush1.msra.mxu0 %v850
  %962 = vmatprep.subr.mxu0 0.0
  %963 = vmatpush1.msra.mxu0 %v851
  %964 = vmatprep.subr.mxu0 0.0
  %965 = vmatpush1.msra.mxu0 %v852
  %966 = vmatprep.subr.mxu0 0.0
  %967 = vmatpush1.msra.mxu0 %v853
  %968 = vmatprep.subr.mxu0 0.0
  %969 = vmatpush1.msra.mxu0 %v854
  %970 = vmatprep.subr.mxu0 0.0
  %971 = vmatpush1.msra.mxu0 %v855
  %972 = vmatprep.subr.mxu0 0.0
  %973 = vmatpush1.msra.mxu0 %v856
  %974 = vmatprep.subr.mxu0 0.0
  %975 = vmatpush1.msra.mxu0 %v857
  %976 = vmatprep.subr.mxu0 0.0
  %977 = vmatpush1.msra.mxu0 %v858
  %978 = vmatprep.subr.mxu0 0.0
  %979 = vmatpush1.msra.mxu0 %v859
  %980 = vmatprep.subr.mxu0 0.0
  %981 = vmatpush1.msra.mxu0 %v860
  %982 = vmatprep.subr.mxu0 0.0
  %983 = vmatpush1.msra.mxu0 %v861
  %984 = vmatprep.subr.mxu0 0.0
  %985 = vmatpush1.msra.mxu0 %v862
  %986 = vmatprep.subr.mxu0 0.0
  %987 = vmatpush1.msra.mxu0 %v863
  %988 = vmatprep.subr.mxu0 0.0
  %989 = vmatpush1.msra.mxu0 %v864
  %990 = vmatprep.subr.mxu0 0.0
  %991 = vmatpush1.msra.mxu0 %v865
  %992 = vmatprep.subr.mxu0 0.0
  %993 = vmatpush1.msra.mxu0 %v866
  %994 = vmatprep.subr.mxu0 0.0
  %995 = vmatpush1.msra.mxu0 %v867
  %996 = vmatprep.subr.mxu0 0.0
  %997 = vmatpush1.msra.mxu0 %v868
  %998 = vmatprep.subr.mxu0 0.0
  %999 = vmatpush1.msra.mxu0 %v869
  %1000 = vmatprep.subr.mxu0 0.0
  %1001 = vmatpush1.msra.mxu0 %v870
  %1002 = vmatprep.subr.mxu0 0.0
  %1003 = vmatpush1.msra.mxu0 %v871
  %1004 = vmatprep.subr.mxu0 0.0
  %1005 = vmatpush1.msra.mxu0 %v872
  %1006 = vmatprep.mubr.f32.mxu0 %v926
  %1007 = vmatmul.mubr.f32.gmra.mrb[0].mxu0 %v894
  %v1008 = vpop.f32.mrb[0].mxu0
  %v1009 = vadd.f32 %v877, %v1008
  %v1010 = vpop.f32.mrb[0].mxu0
  %1011 = vmatprep.mubr.f32.mxu0 %v927
  %1012 = vmatmul.mubr.f32.gmra.mrb[0].mxu0 %v895
  %v1013 = vpop.f32.mrb[0].mxu0
  %v1014 = vadd.f32 %v877, %v1013
  %v1015 = vpop.f32.mrb[0].mxu0
  %1016 = vdwg.mxu0
  %1017 = vst [vmem:[%s6 + $0xa0] sm:$0xff] %v1009
  %1018 = vst [vmem:[%s6 + $0xa8] sm:$0xff] %v1014
  %s1019 = scalar_lea.vmem %s2, 256
  %v1020 = vld [vmem:[%s1019] sm:$0xff]
  %v1021 = vld [vmem:[%s1019 + $0x8] sm:$0xff]
  %v1022 = vld [vmem:[%s1019 + $0x10] sm:$0xff]
  %v1023 = vld [vmem:[%s1019 + $0x18] sm:$0xff]
  %v1024 = vld [vmem:[%s1019 + $0x20] sm:$0xff]
  %v1025 = vld [vmem:[%s1019 + $0x28] sm:$0xff]
  %v1026 = vld [vmem:[%s1019 + $0x30] sm:$0xff]
  %v1027 = vld [vmem:[%s1019 + $0x38] sm:$0xff]
  %v1028 = vld [vmem:[%s1019 + $0x40] sm:$0xff]
  %v1029 = vld [vmem:[%s1019 + $0x48] sm:$0xff]
  %v1030 = vld [vmem:[%s1019 + $0x50] sm:$0xff]
  %v1031 = vld [vmem:[%s1019 + $0x58] sm:$0xff]
  %v1032 = vld [vmem:[%s1019 + $0x60] sm:$0xff]
  %v1033 = vld [vmem:[%s1019 + $0x68] sm:$0xff]
  %v1034 = vld [vmem:[%s1019 + $0x70] sm:$0xff]
  %v1035 = vld [vmem:[%s1019 + $0x78] sm:$0xff]
  %v1036 = vld [vmem:[%s1019 + $0x80] sm:$0xff]
  %v1037 = vld [vmem:[%s1019 + $0x88] sm:$0xff]
  %v1038 = vld [vmem:[%s1019 + $0x90] sm:$0xff]
  %v1039 = vld [vmem:[%s1019 + $0x98] sm:$0xff]
  %v1040 = vld [vmem:[%s1019 + $0xa0] sm:$0xff]
  %v1041 = vld [vmem:[%s1019 + $0xa8] sm:$0xff]
  %v1042 = vld [vmem:[%s1019 + $0xb0] sm:$0xff]
  %v1043 = vld [vmem:[%s1019 + $0xb8] sm:$0xff]
  %v1044 = vld [vmem:[%s1019 + $0xc0] sm:$0xff]
  %v1045 = vld [vmem:[%s1019 + $0xc8] sm:$0xff]
  %v1046 = vld [vmem:[%s1019 + $0xd0] sm:$0xff]
  %v1047 = vld [vmem:[%s1019 + $0xd8] sm:$0xff]
  %v1048 = vld [vmem:[%s1019 + $0xe0] sm:$0xff]
  %v1049 = vld [vmem:[%s1019 + $0xe8] sm:$0xff]
  %v1050 = vld [vmem:[%s1019 + $0xf0] sm:$0xff]
  %v1051 = vld [vmem:[%s1019 + $0xf8] sm:$0xff]
  %v1052 = vld [vmem:[%s4] sm:$0xff]
  %v1053 = vld [vmem:[%s4 + $0x8] sm:$0xff]
  %v1054 = vld [vmem:[%s4 + $0x10] sm:$0xff]
  %v1055 = vld [vmem:[%s4 + $0x18] sm:$0xff]
  %v1056 = vld [vmem:[%s4 + $0x20] sm:$0xff]
  %v1057 = vld [vmem:[%s4 + $0x28] sm:$0xff]
  %v1058 = vld [vmem:[%s4 + $0x30] sm:$0xff]
  %v1059 = vld [vmem:[%s4 + $0x38] sm:$0xff]
  %v1060 = vld [vmem:[%s4 + $0x40] sm:$0xff]
  %v1061 = vld [vmem:[%s4 + $0x48] sm:$0xff]
  %v1062 = vld [vmem:[%s4 + $0x50] sm:$0xff]
  %v1063 = vld [vmem:[%s4 + $0x58] sm:$0xff]
  %v1064 = vld [vmem:[%s4 + $0x60] sm:$0xff]
  %v1065 = vld [vmem:[%s4 + $0x68] sm:$0xff]
  %v1066 = vld [vmem:[%s4 + $0x70] sm:$0xff]
  %v1067 = vld [vmem:[%s4 + $0x78] sm:$0xff]
  %v1068 = vld [vmem:[%s4 + $0x80] sm:$0xff]
  %v1069 = vld [vmem:[%s4 + $0x88] sm:$0xff]
  %v1070 = vld [vmem:[%s4 + $0x90] sm:$0xff]
  %v1071 = vld [vmem:[%s4 + $0x98] sm:$0xff]
  %v1072 = vld [vmem:[%s4 + $0xa0] sm:$0xff]
  %v1073 = vld [vmem:[%s4 + $0xa8] sm:$0xff]
  %v1074 = vld [vmem:[%s4 + $0xb0] sm:$0xff]
  %v1075 = vld [vmem:[%s4 + $0xb8] sm:$0xff]
  %v1076 = vld [vmem:[%s4 + $0xc0] sm:$0xff]
  %v1077 = vld [vmem:[%s4 + $0xc8] sm:$0xff]
  %v1078 = vld [vmem:[%s4 + $0xd0] sm:$0xff]
  %v1079 = vld [vmem:[%s4 + $0xd8] sm:$0xff]
  %v1080 = vld [vmem:[%s4 + $0xe0] sm:$0xff]
  %v1081 = vld [vmem:[%s4 + $0xe8] sm:$0xff]
  %v1082 = vld [vmem:[%s4 + $0xf0] sm:$0xff]
  %v1083 = vld [vmem:[%s4 + $0xf8] sm:$0xff]
  %v1084 = vld [vmem:[%s5 + $0x1] sm:$0x1]
  %v1085 = vlaneseq
  %v1086 = vshrl.u32 %v1085, 7
  %v1087 = vsub.s32 0, %v1086
  %v1088 = vrot.slane %v1084, %v1087
  %1089 = vxpose.xlu0.b32.start [1/16] %v1020, 128
  %1090 = vxpose.xlu0.b32.cont [2/16] %v1021, 128
  %1091 = vxpose.xlu0.b32.cont [3/16] %v1022, 128
  %1092 = vxpose.xlu0.b32.cont [4/16] %v1023, 128
  %1093 = vxpose.xlu0.b32.cont [5/16] %v1024, 128
  %1094 = vxpose.xlu0.b32.cont [6/16] %v1025, 128
  %1095 = vxpose.xlu0.b32.cont [7/16] %v1026, 128
  %1096 = vxpose.xlu0.b32.cont [8/16] %v1027, 128
  %1097 = vxpose.xlu0.b32.cont [9/16] %v1028, 128
  %1098 = vxpose.xlu0.b32.cont [10/16] %v1029, 128
  %1099 = vxpose.xlu0.b32.cont [11/16] %v1030, 128
  %1100 = vxpose.xlu0.b32.cont [12/16] %v1031, 128
  %1101 = vxpose.xlu0.b32.cont [13/16] %v1032, 128
  %1102 = vxpose.xlu0.b32.cont [14/16] %v1033, 128
  %1103 = vxpose.xlu0.b32.cont [15/16] %v1034, 128
  %1104 = vxpose.xlu0.b32.end [16/16] %v1035, 128
  %v1105 = vpop.trf.xlu0
  %v1106 = vpop.trf.xlu0
  %v1107 = vpop.trf.xlu0
  %v1108 = vpop.trf.xlu0
  %v1109 = vpop.trf.xlu0
  %v1110 = vpop.trf.xlu0
  %v1111 = vpop.trf.xlu0
  %v1112 = vpop.trf.xlu0
  %v1113 = vpop.trf.xlu0
  %v1114 = vpop.trf.xlu0
  %v1115 = vpop.trf.xlu0
  %v1116 = vpop.trf.xlu0
  %v1117 = vpop.trf.xlu0
  %v1118 = vpop.trf.xlu0
  %v1119 = vpop.trf.xlu0
  %v1120 = vpop.trf.xlu0
  %1121 = vxpose.xlu0.b32.start [1/16] %v1036, 128
  %1122 = vxpose.xlu0.b32.cont [2/16] %v1037, 128
  %1123 = vxpose.xlu0.b32.cont [3/16] %v1038, 128
  %1124 = vxpose.xlu0.b32.cont [4/16] %v1039, 128
  %1125 = vxpose.xlu0.b32.cont [5/16] %v1040, 128
  %1126 = vxpose.xlu0.b32.cont [6/16] %v1041, 128
  %1127 = vxpose.xlu0.b32.cont [7/16] %v1042, 128
  %1128 = vxpose.xlu0.b32.cont [8/16] %v1043, 128
  %1129 = vxpose.xlu0.b32.cont [9/16] %v1044, 128
  %1130 = vxpose.xlu0.b32.cont [10/16] %v1045, 128
  %1131 = vxpose.xlu0.b32.cont [11/16] %v1046, 128
  %1132 = vxpose.xlu0.b32.cont [12/16] %v1047, 128
  %1133 = vxpose.xlu0.b32.cont [13/16] %v1048, 128
  %1134 = vxpose.xlu0.b32.cont [14/16] %v1049, 128
  %1135 = vxpose.xlu0.b32.cont [15/16] %v1050, 128
  %1136 = vxpose.xlu0.b32.end [16/16] %v1051, 128
  %v1137 = vpop.trf.xlu0
  %v1138 = vpop.trf.xlu0
  %v1139 = vpop.trf.xlu0
  %v1140 = vpop.trf.xlu0
  %v1141 = vpop.trf.xlu0
  %v1142 = vpop.trf.xlu0
  %v1143 = vpop.trf.xlu0
  %v1144 = vpop.trf.xlu0
  %v1145 = vpop.trf.xlu0
  %v1146 = vpop.trf.xlu0
  %v1147 = vpop.trf.xlu0
  %v1148 = vpop.trf.xlu0
  %v1149 = vpop.trf.xlu0
  %v1150 = vpop.trf.xlu0
  %v1151 = vpop.trf.xlu0
  %v1152 = vpop.trf.xlu0
  %1153 = vmatprep.subr.mxu0 0.0
  %1154 = vmatpush1.msra.mxu0 %v1052
  %1155 = vmatprep.subr.mxu0 0.0
  %1156 = vmatpush1.msra.mxu0 %v1053
  %1157 = vmatprep.subr.mxu0 0.0
  %1158 = vmatpush1.msra.mxu0 %v1054
  %1159 = vmatprep.subr.mxu0 0.0
  %1160 = vmatpush1.msra.mxu0 %v1055
  %1161 = vmatprep.subr.mxu0 0.0
  %1162 = vmatpush1.msra.mxu0 %v1056
  %1163 = vmatprep.subr.mxu0 0.0
  %1164 = vmatpush1.msra.mxu0 %v1057
  %1165 = vmatprep.subr.mxu0 0.0
  %1166 = vmatpush1.msra.mxu0 %v1058
  %1167 = vmatprep.subr.mxu0 0.0
  %1168 = vmatpush1.msra.mxu0 %v1059
  %1169 = vmatprep.subr.mxu0 0.0
  %1170 = vmatpush1.msra.mxu0 %v1060
  %1171 = vmatprep.subr.mxu0 0.0
  %1172 = vmatpush1.msra.mxu0 %v1061
  %1173 = vmatprep.subr.mxu0 0.0
  %1174 = vmatpush1.msra.mxu0 %v1062
  %1175 = vmatprep.subr.mxu0 0.0
  %1176 = vmatpush1.msra.mxu0 %v1063
  %1177 = vmatprep.subr.mxu0 0.0
  %1178 = vmatpush1.msra.mxu0 %v1064
  %1179 = vmatprep.subr.mxu0 0.0
  %1180 = vmatpush1.msra.mxu0 %v1065
  %1181 = vmatprep.subr.mxu0 0.0
  %1182 = vmatpush1.msra.mxu0 %v1066
  %1183 = vmatprep.subr.mxu0 0.0
  %1184 = vmatpush1.msra.mxu0 %v1067
  %1185 = vmatprep.subr.mxu0 0.0
  %1186 = vmatpush1.msra.mxu0 %v1068
  %1187 = vmatprep.subr.mxu0 0.0
  %1188 = vmatpush1.msra.mxu0 %v1069
  %1189 = vmatprep.subr.mxu0 0.0
  %1190 = vmatpush1.msra.mxu0 %v1070
  %1191 = vmatprep.subr.mxu0 0.0
  %1192 = vmatpush1.msra.mxu0 %v1071
  %1193 = vmatprep.subr.mxu0 0.0
  %1194 = vmatpush1.msra.mxu0 %v1072
  %1195 = vmatprep.subr.mxu0 0.0
  %1196 = vmatpush1.msra.mxu0 %v1073
  %1197 = vmatprep.subr.mxu0 0.0
  %1198 = vmatpush1.msra.mxu0 %v1074
  %1199 = vmatprep.subr.mxu0 0.0
  %1200 = vmatpush1.msra.mxu0 %v1075
  %1201 = vmatprep.subr.mxu0 0.0
  %1202 = vmatpush1.msra.mxu0 %v1076
  %1203 = vmatprep.subr.mxu0 0.0
  %1204 = vmatpush1.msra.mxu0 %v1077
  %1205 = vmatprep.subr.mxu0 0.0
  %1206 = vmatpush1.msra.mxu0 %v1078
  %1207 = vmatprep.subr.mxu0 0.0
  %1208 = vmatpush1.msra.mxu0 %v1079
  %1209 = vmatprep.subr.mxu0 0.0
  %1210 = vmatpush1.msra.mxu0 %v1080
  %1211 = vmatprep.subr.mxu0 0.0
  %1212 = vmatpush1.msra.mxu0 %v1081
  %1213 = vmatprep.subr.mxu0 0.0
  %1214 = vmatpush1.msra.mxu0 %v1082
  %1215 = vmatprep.subr.mxu0 0.0
  %1216 = vmatpush1.msra.mxu0 %v1083
  %1217 = vmatprep.mubr.f32.mxu0 %v1137
  %1218 = vmatmul.mubr.f32.gmra.mrb[0].mxu0 %v1105
  %v1219 = vpop.f32.mrb[0].mxu0
  %v1220 = vadd.f32 %v1088, %v1219
  %v1221 = vpop.f32.mrb[0].mxu0
  %1222 = vmatprep.mubr.f32.mxu0 %v1138
  %1223 = vmatmul.mubr.f32.gmra.mrb[0].mxu0 %v1106
  %v1224 = vpop.f32.mrb[0].mxu0
  %v1225 = vadd.f32 %v1088, %v1224
  %v1226 = vpop.f32.mrb[0].mxu0
  %1227 = vdwg.mxu0
  %1228 = vst [vmem:[%s6 + $0xb0] sm:$0xff] %v1220
  %1229 = vst [vmem:[%s6 + $0xb8] sm:$0xff] %v1225
  // Predicated region
  $region26: #{output_block_forward.1} parent=0 // pred_check
    _
  $region27: #{output_block_forward.1} parent=0 // pred_check_branch
    %1231 = sbr.rel (0) target = $region29
  $region28: #{output_block_forward.1} parent=0 // pred_region
    _
  $region29: #{output_block_forward.1} parent=0 // pred_fallthru
    _
  // Predicated region
  $region30: #{output_block_forward.1} parent=0 // pred_check
    _
  $region31: #{output_block_forward.1} parent=0 // pred_check_branch
    %1233 = sbr.rel (0) target = $region33
  $region32: #{output_block_forward.1} parent=0 // pred_region
    _
  $region33: #{output_block_forward.1} parent=0 // pred_fallthru
    _

</llo_original>
